<compile_context>
chip_gen: v6e
topology: v6e:2x2x1
jax: 0.10.0
libtpu: 0.0.40
codegen_flags: <defaults>
</compile_context>

<pallas_src>
import functools
import math

import jax
import jax.numpy as jnp
from jax.experimental import pallas as pl
from jax.experimental.pallas import tpu as pltpu


_VMEM_LIMIT = 48 * 1024 * 1024  # headroom under v7x's 64 MiB physical VMEM


def _pick_tile(dim, target):
    """Largest legal tile: `target` if it divides `dim`, else the full extent."""
    return target if (dim >= target and dim % target == 0) else dim


# ----------------------------- kernels ------------------------------------ #

def _linear_kernel(x_ref, w_ref, b_ref, o_ref, acc_ref):
    @pl.when(pl.program_id(2) == 0)
    def _():
        acc_ref[...] = jnp.zeros_like(acc_ref)

    acc_ref[...] += jnp.dot(
        x_ref[...].astype(jnp.bfloat16),
        w_ref[...].astype(jnp.bfloat16),
        preferred_element_type=jnp.float32,
    )

    @pl.when(pl.program_id(2) == pl.num_programs(2) - 1)
    def _():
        o_ref[...] = (acc_ref[...] + b_ref[...]).astype(o_ref.dtype)


def _linear_gelu_kernel(x_ref, w_ref, b_ref, o_ref, acc_ref):
    @pl.when(pl.program_id(2) == 0)
    def _():
        acc_ref[...] = jnp.zeros_like(acc_ref)

    acc_ref[...] += jnp.dot(
        x_ref[...].astype(jnp.bfloat16),
        w_ref[...].astype(jnp.bfloat16),
        preferred_element_type=jnp.float32,
    )

    @pl.when(pl.program_id(2) == pl.num_programs(2) - 1)
    def _():
        y = acc_ref[...] + b_ref[...]
        # exact erf-based gelu, matching the reference gelu()
        g = y * 0.5 * (1.0 + jax.lax.erf(y * (1.0 / math.sqrt(2.0))))
        o_ref[...] = g.astype(o_ref.dtype)


def _linear_res_ln_kernel(x_ref, w_ref, b_ref, res_ref, g_ref, beta_ref,
                          o_ref, acc_ref):
    """y = LayerNorm(x @ W + b + residual); LN over the full feature dim."""
    @pl.when(pl.program_id(1) == 0)
    def _():
        acc_ref[...] = jnp.zeros_like(acc_ref)

    acc_ref[...] += jnp.dot(
        x_ref[...].astype(jnp.bfloat16),
        w_ref[...].astype(jnp.bfloat16),
        preferred_element_type=jnp.float32,
    )

    @pl.when(pl.program_id(1) == pl.num_programs(1) - 1)
    def _():
        y = acc_ref[...] + b_ref[...] + res_ref[...].astype(jnp.float32)
        mu = jnp.mean(y, axis=-1, keepdims=True)
        var = jnp.mean((y - mu) ** 2, axis=-1, keepdims=True)
        o_ref[...] = ((y - mu) * jax.lax.rsqrt(var + 1e-12) * g_ref[...]
                      + beta_ref[...]).astype(o_ref.dtype)


def _attention_kernel(q_ref, k_ref, v_ref, m_ref, scores_ref, ctx_ref, *, scale):
    # one batch element per grid step; all heads handled via batched matmuls
    q = q_ref[0]          # (nh, S, d) bf16
    k = k_ref[0]          # (nh, S, d) bf16
    v = v_ref[0]          # (nh, S, d) bf16
    mask = m_ref[0, 0]    # (1, S) f32, additive over key positions

    # scores: contract on head_dim (no explicit transpose of k)
    s = jax.lax.dot_general(
        q, k, dimension_numbers=(((2,), (2,)), ((0,), (0,))),
        preferred_element_type=jnp.float32)          # (nh, S, S)
    s = s * scale + mask[None, :, :]
    scores_ref[0] = s                                # layer_att (pre-softmax, +mask)

    # softmax in f32, reciprocal on the EUP slot
    s_max = jnp.max(s, axis=-1, keepdims=True)
    p = jnp.exp(s - s_max)
    denom = jnp.sum(p, axis=-1, keepdims=True)
    p = p * pl.reciprocal(denom, approx=True)

    ctx = jax.lax.dot_general(
        p.astype(v.dtype), v, dimension_numbers=(((2,), (1,)), ((0,), (0,))),
        preferred_element_type=jnp.float32)          # (nh, S, d)
    ctx_ref[0] = ctx.astype(ctx_ref.dtype)


# ---------------------------- wrappers ------------------------------------- #

def pallas_linear(x, w, b, activation=None, out_dtype=jnp.float32,
                  tm=256, tn=256, tk=512):
    M, K = x.shape
    Kw, N = w.shape
    assert K == Kw
    tm = _pick_tile(M, tm)
    tn = _pick_tile(N, tn)
    tk = _pick_tile(K, tk)
    kern = _linear_gelu_kernel if activation == "gelu" else _linear_kernel
    return pl.pallas_call(
        kern,
        out_shape=jax.ShapeDtypeStruct((M, N), out_dtype),
        grid_spec=pltpu.PrefetchScalarGridSpec(
            num_scalar_prefetch=0,
            grid=(M // tm, N // tn, K // tk),
            in_specs=[
                pl.BlockSpec((tm, tk), lambda i, j, k: (i, k)),
                pl.BlockSpec((tk, tn), lambda i, j, k: (k, j)),
                pl.BlockSpec((1, tn), lambda i, j, k: (0, j)),
            ],
            out_specs=pl.BlockSpec((tm, tn), lambda i, j, k: (i, j)),
            scratch_shapes=[pltpu.VMEM((tm, tn), jnp.float32)],
        ),
        compiler_params=pltpu.CompilerParams(
            dimension_semantics=("parallel", "parallel", "arbitrary"),
            vmem_limit_bytes=_VMEM_LIMIT,
        ),
    )(x, w, b.reshape(1, N))


def pallas_linear_res_ln(x, w, b, res, gamma, beta, out_dtype=jnp.float32,
                         tm=256, tk=512):
    """Fused dense + residual add + LayerNorm (full feature dim per row tile)."""
    M, K = x.shape
    Kw, N = w.shape
    assert K == Kw
    tm = _pick_tile(M, tm)
    tk = _pick_tile(K, tk)
    return pl.pallas_call(
        _linear_res_ln_kernel,
        out_shape=jax.ShapeDtypeStruct((M, N), out_dtype),
        grid_spec=pltpu.PrefetchScalarGridSpec(
            num_scalar_prefetch=0,
            grid=(M // tm, K // tk),
            in_specs=[
                pl.BlockSpec((tm, tk), lambda i, k: (i, k)),
                pl.BlockSpec((tk, N), lambda i, k: (k, 0)),
                pl.BlockSpec((1, N), lambda i, k: (0, 0)),
                pl.BlockSpec((tm, N), lambda i, k: (i, 0)),
                pl.BlockSpec((1, N), lambda i, k: (0, 0)),
                pl.BlockSpec((1, N), lambda i, k: (0, 0)),
            ],
            out_specs=pl.BlockSpec((tm, N), lambda i, k: (i, 0)),
            scratch_shapes=[pltpu.VMEM((tm, N), jnp.float32)],
        ),
        compiler_params=pltpu.CompilerParams(
            dimension_semantics=("parallel", "arbitrary"),
            vmem_limit_bytes=_VMEM_LIMIT,
        ),
    )(x, w, b.reshape(1, N), res, gamma.reshape(1, N), beta.reshape(1, N))


def pallas_attention(q, k, v, mask, scale):
    # q, k, v: (B, nh, S, d) bf16; mask: (B, 1, 1, S) f32
    B, nh, S, d = q.shape
    kern = functools.partial(_attention_kernel, scale=scale)
    scores, ctx = pl.pallas_call(
        kern,
        out_shape=(
            jax.ShapeDtypeStruct((B, nh, S, S), jnp.float32),
            jax.ShapeDtypeStruct((B, nh, S, d), jnp.bfloat16),
        ),
        grid=(B,),
        in_specs=[
            pl.BlockSpec((1, nh, S, d), lambda b: (b, 0, 0, 0)),
            pl.BlockSpec((1, nh, S, d), lambda b: (b, 0, 0, 0)),
            pl.BlockSpec((1, nh, S, d), lambda b: (b, 0, 0, 0)),
            pl.BlockSpec((1, 1, 1, S), lambda b: (b, 0, 0, 0)),
        ],
        out_specs=(
            pl.BlockSpec((1, nh, S, S), lambda b: (b, 0, 0, 0)),
            pl.BlockSpec((1, nh, S, d), lambda b: (b, 0, 0, 0)),
        ),
        compiler_params=pltpu.CompilerParams(
            dimension_semantics=("parallel",),
            vmem_limit_bytes=_VMEM_LIMIT,
        ),
    )(q, k, v, mask)
    return scores, ctx


# --------------------------- BertLayer ------------------------------------- #

def init_bert_layer_params(key, hidden, intermediate):
    ks = jax.random.split(key, 6)
    std = 0.02

    def w(k, shape):
        # weights stored bf16 (MXU operand dtype), biases / LN params f32
        return (jax.random.normal(k, shape, jnp.float32) * std).astype(jnp.bfloat16)

    wq = w(ks[0], (hidden, hidden))
    wk = w(ks[1], (hidden, hidden))
    wv = w(ks[2], (hidden, hidden))
    p = {
        # fused QKV projection: (H, 3H), bias (3H,)
        "w_qkv": jnp.concatenate([wq, wk, wv], axis=1),
        "b_qkv": jnp.zeros((3 * hidden,), jnp.float32),
        # self-output dense + LayerNorm
        "wo": w(ks[3], (hidden, hidden)),
        "bo": jnp.zeros((hidden,), jnp.float32),
        "ln1_g": jnp.ones((hidden,), jnp.float32),
        "ln1_b": jnp.zeros((hidden,), jnp.float32),
        # intermediate (gelu) + output dense + LayerNorm
        "wi": w(ks[4], (hidden, intermediate)),
        "bi": jnp.zeros((intermediate,), jnp.float32),
        "wout": w(ks[5], (intermediate, hidden)),
        "bout": jnp.zeros((hidden,), jnp.float32),
        "ln2_g": jnp.ones((hidden,), jnp.float32),
        "ln2_b": jnp.zeros((hidden,), jnp.float32),
    }
    return p


def bert_layer_forward(params, hidden_states, attention_mask, num_heads):
    # TODO(synk): quantization paths (act_quant_fn / QuantizeLinear fake-quant /
    # LearnableBias moves / dropout) are identity at the 32-bit eval config and
    # are omitted.
    B, S, H = hidden_states.shape
    d = H // num_heads
    x2d = hidden_states.reshape(B * S, H)

    # --- BertSelfAttention: fused QKV projection (bf16 output for the MXU) ---
    qkv = pallas_linear(x2d, params["w_qkv"], params["b_qkv"],
                        out_dtype=jnp.bfloat16)
    q, k, v = jnp.split(qkv, 3, axis=-1)

    def split_heads(t):
        return t.reshape(B, S, num_heads, d).transpose(0, 2, 1, 3)

    qh, kh, vh = split_heads(q), split_heads(k), split_heads(v)
    layer_att, ctx = pallas_attention(qh, kh, vh, attention_mask,
                                      1.0 / math.sqrt(d))
    ctx2d = ctx.transpose(0, 2, 1, 3).reshape(B * S, H)

    # --- BertSelfOutput: dense + residual + LayerNorm fused ---
    attention_output = pallas_linear_res_ln(
        ctx2d, params["wo"], params["bo"], x2d,
        params["ln1_g"], params["ln1_b"], out_dtype=jnp.float32)

    # --- BertIntermediate: dense + erf-GELU fused (bf16 activation out) ---
    intermediate = pallas_linear(attention_output, params["wi"], params["bi"],
                                 activation="gelu", out_dtype=jnp.bfloat16)

    # --- BertOutput: dense + residual + LayerNorm fused ---
    layer_output = pallas_linear_res_ln(
        intermediate, params["wout"], params["bout"], attention_output,
        params["ln2_g"], params["ln2_b"], out_dtype=jnp.float32)

    return layer_output.reshape(B, S, H), layer_att


# ------------------------------- main -------------------------------------- #

if __name__ == "__main__":
    B, S, H = 2, 8, 32
    NUM_HEADS = 4
    INTERMEDIATE = 64

    key = jax.random.PRNGKey(0)
    k_x, k_p = jax.random.split(key)

    hidden_states = jax.random.normal(k_x, (B, S, H), jnp.float32)

    # BERT-style extended additive mask: 0 for kept positions, -10000 for
    # masked; mask out the last two positions of batch element 1.
    keep = jnp.ones((B, S), jnp.float32).at[1, -2:].set(0.0)
    attention_mask = ((1.0 - keep) * -10000.0).reshape(B, 1, 1, S)

    params = init_bert_layer_params(k_p, H, INTERMEDIATE)

    fwd = jax.jit(bert_layer_forward, static_argnames=("num_heads",))
    layer_output, layer_att = fwd(params, hidden_states, attention_mask,
                                  num_heads=NUM_HEADS)
    jax.block_until_ready((layer_output, layer_att))

    assert layer_output.shape == (B, S, H)
    assert layer_att.shape == (B, NUM_HEADS, S, S)
    assert bool(jnp.all(jnp.isfinite(layer_output)))
    assert bool(jnp.all(jnp.isfinite(layer_att)))
    print("KERNEL_OK")
</pallas_src>

<mosaic_0001>
module attributes {stable_mosaic.version = 11 : i64} {
  func.func @_linear_kernel(%arg0: i32, %arg1: i32, %arg2: i32, %arg3: memref<16x32xf32, #tpu.memory_space<vmem>>, %arg4: memref<32x96xbf16, #tpu.memory_space<vmem>>, %arg5: memref<1x96xf32, #tpu.memory_space<vmem>>, %arg6: memref<16x96xbf16, #tpu.memory_space<vmem>>, %arg7: memref<16x96xf32, #tpu.memory_space<vmem>>) attributes {dimension_semantics = [#tpu.dimension_semantics<parallel>, #tpu.dimension_semantics<parallel>, #tpu.dimension_semantics<arbitrary>], iteration_bounds = array<i64: 1, 1, 1>, scalar_prefetch = 0 : i64, scratch_operands = 1 : i64, tpu.core_type = #tpu.core_type<tc>, window_params = [{transform_indices = @transform_0, window_bounds = array<i64: 16, 32>}, {transform_indices = @transform_1, window_bounds = array<i64: 32, 96>}, {transform_indices = @transform_2, window_bounds = array<i64: 1, 96>}, {transform_indices = @transform_3, window_bounds = array<i64: 16, 96>}]} {
    %c0_i32 = arith.constant 0 : i32
    %0 = arith.cmpi eq, %arg2, %c0_i32 : i32
    %1 = arith.extui %0 : i1 to i32
    %c0_i32_0 = arith.constant 0 : i32
    %2 = arith.cmpi ne, %1, %c0_i32_0 : i32
    scf.if %2 {
      %cst_10 = arith.constant 0.000000e+00 : f32
      %13 = vector.broadcast %cst_10 : f32 to vector<16x96xf32>
      %c0_11 = arith.constant 0 : index
      %c0_12 = arith.constant 0 : index
      %14 = vector.load %arg7[%c0_11, %c0_12] : memref<16x96xf32, #tpu.memory_space<vmem>>, vector<16x96xf32>
      tpu.vector_store %arg7[%c0_11, %c0_12], %13 {strides = array<i32>} : memref<16x96xf32, #tpu.memory_space<vmem>>, vector<16x96xf32>,
    } else {
    }
    %c0 = arith.constant 0 : index
    %c0_1 = arith.constant 0 : index
    %3 = vector.load %arg7[%c0, %c0_1] : memref<16x96xf32, #tpu.memory_space<vmem>>, vector<16x96xf32>
    %c0_2 = arith.constant 0 : index
    %c0_3 = arith.constant 0 : index
    %4 = vector.load %arg3[%c0_2, %c0_3] : memref<16x32xf32, #tpu.memory_space<vmem>>, vector<16x32xf32>
    %5 = arith.truncf %4 : vector<16x32xf32> to vector<16x32xbf16>
    %c0_4 = arith.constant 0 : index
    %c0_5 = arith.constant 0 : index
    %6 = vector.load %arg4[%c0_4, %c0_5] : memref<32x96xbf16, #tpu.memory_space<vmem>>, vector<32x96xbf16>
    %cst = arith.constant dense<0.000000e+00> : vector<16x96xf32>
    %7 = tpu.matmul %5, %6, %cst {dimension_numbers = #tpu.dot_dimension_numbers<[1], [0], [0], [1], [0, 0, 1, 1], [], []>} : vector<16x32xbf16>, vector<32x96xbf16>, vector<16x96xf32> -> vector<16x96xf32>
    %8 = arith.addf %3, %7 : vector<16x96xf32>
    %c0_6 = arith.constant 0 : index
    %c0_7 = arith.constant 0 : index
    %9 = vector.load %arg7[%c0_6, %c0_7] : memref<16x96xf32, #tpu.memory_space<vmem>>, vector<16x96xf32>
    tpu.vector_store %arg7[%c0_6, %c0_7], %8 {strides = array<i32>} : memref<16x96xf32, #tpu.memory_space<vmem>>, vector<16x96xf32>,
    %c0_i32_8 = arith.constant 0 : i32
    %10 = arith.cmpi eq, %arg2, %c0_i32_8 : i32
    %11 = arith.extui %10 : i1 to i32
    %c0_i32_9 = arith.constant 0 : i32
    %12 = arith.cmpi ne, %11, %c0_i32_9 : i32
    scf.if %12 {
      %c0_10 = arith.constant 0 : index
      %c0_11 = arith.constant 0 : index
      %13 = vector.load %arg7[%c0_10, %c0_11] : memref<16x96xf32, #tpu.memory_space<vmem>>, vector<16x96xf32>
      %c0_12 = arith.constant 0 : index
      %c0_13 = arith.constant 0 : index
      %14 = vector.load %arg5[%c0_12, %c0_13] : memref<1x96xf32, #tpu.memory_space<vmem>>, vector<1x96xf32>
      %15 = vector.broadcast %14 : vector<1x96xf32> to vector<16x96xf32>
      %16 = arith.addf %13, %15 : vector<16x96xf32>
      %17 = arith.truncf %16 : vector<16x96xf32> to vector<16x96xbf16>
      %c0_14 = arith.constant 0 : index
      %c0_15 = arith.constant 0 : index
      %18 = vector.load %arg6[%c0_14, %c0_15] : memref<16x96xbf16, #tpu.memory_space<vmem>>, vector<16x96xbf16>
      tpu.vector_store %arg6[%c0_14, %c0_15], %17 {strides = array<i32>} : memref<16x96xbf16, #tpu.memory_space<vmem>>, vector<16x96xbf16>,
    } else {
    }
    return
  }
  func.func @transform_0(%arg0: i32, %arg1: i32, %arg2: i32) -> (i32, i32) {
    %c0_i32 = arith.constant 0 : i32
    return %arg0, %arg2 : i32, i32
  }
  func.func @transform_1(%arg0: i32, %arg1: i32, %arg2: i32) -> (i32, i32) {
    %c0_i32 = arith.constant 0 : i32
    return %arg2, %arg1 : i32, i32
  }
  func.func @transform_2(%arg0: i32, %arg1: i32, %arg2: i32) -> (i32, i32) {
    %c0_i32 = arith.constant 0 : i32
    %c0_i32_0 = arith.constant 0 : i32
    return %c0_i32, %arg1 : i32, i32
  }
  func.func @transform_3(%arg0: i32, %arg1: i32, %arg2: i32) -> (i32, i32) {
    %c0_i32 = arith.constant 0 : i32
    return %arg0, %arg1 : i32, i32
  }
}

module attributes {stable_mosaic.version = 11 : i64} {
  func.func @_attention_kernel(%arg0: i32, %arg1: memref<1x4x8x8xbf16, #tpu.memory_space<vmem>>, %arg2: memref<1x4x8x8xbf16, #tpu.memory_space<vmem>>, %arg3: memref<1x4x8x8xbf16, #tpu.memory_space<vmem>>, %arg4: memref<1x1x1x8xf32, #tpu.memory_space<vmem>>, %arg5: memref<1x4x8x8xf32, #tpu.memory_space<vmem>>, %arg6: memref<1x4x8x8xbf16, #tpu.memory_space<vmem>>) attributes {dimension_semantics = [#tpu.dimension_semantics<parallel>], iteration_bounds = array<i64: 2>, scalar_prefetch = 0 : i64, scratch_operands = 0 : i64, tpu.core_type = #tpu.core_type<tc>, window_params = [{transform_indices = @transform_0, window_bounds = array<i64: 1, 4, 8, 8>}, {transform_indices = @transform_1, window_bounds = array<i64: 1, 4, 8, 8>}, {transform_indices = @transform_2, window_bounds = array<i64: 1, 4, 8, 8>}, {transform_indices = @transform_3, window_bounds = array<i64: 1, 1, 1, 8>}, {transform_indices = @transform_4, window_bounds = array<i64: 1, 4, 8, 8>}, {transform_indices = @transform_5, window_bounds = array<i64: 1, 4, 8, 8>}]} {
    %c0 = arith.constant 0 : index
    %c0_0 = arith.constant 0 : index
    %c0_1 = arith.constant 0 : index
    %c0_2 = arith.constant 0 : index
    %0 = vector.load %arg1[%c0, %c0_0, %c0_1, %c0_2] : memref<1x4x8x8xbf16, #tpu.memory_space<vmem>>, vector<1x4x8x8xbf16>
    %1 = vector.shape_cast %0 : vector<1x4x8x8xbf16> to vector<4x8x8xbf16>
    %c0_3 = arith.constant 0 : index
    %c0_4 = arith.constant 0 : index
    %c0_5 = arith.constant 0 : index
    %c0_6 = arith.constant 0 : index
    %2 = vector.load %arg2[%c0_3, %c0_4, %c0_5, %c0_6] : memref<1x4x8x8xbf16, #tpu.memory_space<vmem>>, vector<1x4x8x8xbf16>
    %3 = vector.shape_cast %2 : vector<1x4x8x8xbf16> to vector<4x8x8xbf16>
    %c0_7 = arith.constant 0 : index
    %c0_8 = arith.constant 0 : index
    %c0_9 = arith.constant 0 : index
    %c0_10 = arith.constant 0 : index
    %4 = vector.load %arg3[%c0_7, %c0_8, %c0_9, %c0_10] : memref<1x4x8x8xbf16, #tpu.memory_space<vmem>>, vector<1x4x8x8xbf16>
    %5 = vector.shape_cast %4 : vector<1x4x8x8xbf16> to vector<4x8x8xbf16>
    %c0_11 = arith.constant 0 : index
    %c0_12 = arith.constant 0 : index
    %c0_13 = arith.constant 0 : index
    %c0_14 = arith.constant 0 : index
    %6 = vector.load %arg4[%c0_11, %c0_12, %c0_13, %c0_14] : memref<1x1x1x8xf32, #tpu.memory_space<vmem>>, vector<1x1x1x8xf32>
    %7 = vector.shape_cast %6 : vector<1x1x1x8xf32> to vector<1x8xf32>
    %cst = arith.constant dense<0.000000e+00> : vector<4x8x8xf32>
    %8 = tpu.matmul %1, %3, %cst {dimension_numbers = #tpu.dot_dimension_numbers<[2], [2], [1], [1], [0, 0, 0, 1, 1, 1], [0], [0]>} : vector<4x8x8xbf16>, vector<4x8x8xbf16>, vector<4x8x8xf32> -> vector<4x8x8xf32>
    %cst_15 = arith.constant 0.353553385 : f32
    %9 = vector.broadcast %cst_15 : f32 to vector<4x8x8xf32>
    %10 = arith.mulf %8, %9 : vector<4x8x8xf32>
    %11 = vector.shape_cast %7 : vector<1x8xf32> to vector<1x1x8xf32>
    %12 = vector.broadcast %11 : vector<1x1x8xf32> to vector<4x8x8xf32>
    %13 = arith.addf %10, %12 : vector<4x8x8xf32>
    %c0_16 = arith.constant 0 : index
    %c0_17 = arith.constant 0 : index
    %c0_18 = arith.constant 0 : index
    %c0_19 = arith.constant 0 : index
    %14 = vector.load %arg5[%c0_16, %c0_17, %c0_18, %c0_19] : memref<1x4x8x8xf32, #tpu.memory_space<vmem>>, vector<1x4x8x8xf32>
    %15 = vector.shape_cast %14 : vector<1x4x8x8xf32> to vector<4x8x8xf32>
    %16 = vector.shape_cast %13 : vector<4x8x8xf32> to vector<1x4x8x8xf32>
    tpu.vector_store %arg5[%c0_16, %c0_17, %c0_18, %c0_19], %16 {strides = array<i32>} : memref<1x4x8x8xf32, #tpu.memory_space<vmem>>, vector<1x4x8x8xf32>,
    %cst_20 = arith.constant dense<0xFF800000> : vector<4x8xf32>
    %17 = vector.multi_reduction <maximumf>, %13, %cst_20 [2] : vector<4x8x8xf32> to vector<4x8xf32>
    %18 = vector.shape_cast %17 : vector<4x8xf32> to vector<4x8x1xf32>
    %19 = vector.broadcast %18 : vector<4x8x1xf32> to vector<4x8x8xf32>
    %20 = arith.subf %13, %19 : vector<4x8x8xf32>
    %21 = math.exp %20 : vector<4x8x8xf32>
    %cst_21 = arith.constant dense<0.000000e+00> : vector<4x8xf32>
    %22 = vector.multi_reduction <add>, %21, %cst_21 [2] : vector<4x8x8xf32> to vector<4x8xf32>
    %23 = vector.shape_cast %22 : vector<4x8xf32> to vector<4x8x1xf32>
    %24 = tpu.reciprocal %23 {approx = true} : vector<4x8x1xf32> -> vector<4x8x1xf32>
    %25 = vector.broadcast %24 : vector<4x8x1xf32> to vector<4x8x8xf32>
    %26 = arith.mulf %21, %25 : vector<4x8x8xf32>
    %27 = arith.truncf %26 : vector<4x8x8xf32> to vector<4x8x8xbf16>
    %cst_22 = arith.constant dense<0.000000e+00> : vector<4x8x8xf32>
    %28 = tpu.matmul %27, %5, %cst_22 {dimension_numbers = #tpu.dot_dimension_numbers<[2], [1], [1], [2], [0, 0, 0, 1, 1, 2], [0], [0]>} : vector<4x8x8xbf16>, vector<4x8x8xbf16>, vector<4x8x8xf32> -> vector<4x8x8xf32>
    %29 = arith.truncf %28 : vector<4x8x8xf32> to vector<4x8x8xbf16>
    %c0_23 = arith.constant 0 : index
    %c0_24 = arith.constant 0 : index
    %c0_25 = arith.constant 0 : index
    %c0_26 = arith.constant 0 : index
    %30 = vector.load %arg6[%c0_23, %c0_24, %c0_25, %c0_26] : memref<1x4x8x8xbf16, #tpu.memory_space<vmem>>, vector<1x4x8x8xbf16>
    %31 = vector.shape_cast %30 : vector<1x4x8x8xbf16> to vector<4x8x8xbf16>
    %32 = vector.shape_cast %29 : vector<4x8x8xbf16> to vector<1x4x8x8xbf16>
    tpu.vector_store %arg6[%c0_23, %c0_24, %c0_25, %c0_26], %32 {strides = array<i32>} : memref<1x4x8x8xbf16, #tpu.memory_space<vmem>>, vector<1x4x8x8xbf16>,
    return
  }
  func.func @transform_0(%arg0: i32) -> (i32, i32, i32, i32) {
    %c0_i32 = arith.constant 0 : i32
    %c0_i32_0 = arith.constant 0 : i32
    %c0_i32_1 = arith.constant 0 : i32
    %c0_i32_2 = arith.constant 0 : i32
    return %arg0, %c0_i32, %c0_i32_0, %c0_i32_1 : i32, i32, i32, i32
  }
  func.func @transform_1(%arg0: i32) -> (i32, i32, i32, i32) {
    %c0_i32 = arith.constant 0 : i32
    %c0_i32_0 = arith.constant 0 : i32
    %c0_i32_1 = arith.constant 0 : i32
    %c0_i32_2 = arith.constant 0 : i32
    return %arg0, %c0_i32, %c0_i32_0, %c0_i32_1 : i32, i32, i32, i32
  }
  func.func @transform_2(%arg0: i32) -> (i32, i32, i32, i32) {
    %c0_i32 = arith.constant 0 : i32
    %c0_i32_0 = arith.constant 0 : i32
    %c0_i32_1 = arith.constant 0 : i32
    %c0_i32_2 = arith.constant 0 : i32
    return %arg0, %c0_i32, %c0_i32_0, %c0_i32_1 : i32, i32, i32, i32
  }
  func.func @transform_3(%arg0: i32) -> (i32, i32, i32, i32) {
    %c0_i32 = arith.constant 0 : i32
    %c0_i32_0 = arith.constant 0 : i32
    %c0_i32_1 = arith.constant 0 : i32
    %c0_i32_2 = arith.constant 0 : i32
    return %arg0, %c0_i32, %c0_i32_0, %c0_i32_1 : i32, i32, i32, i32
  }
  func.func @transform_4(%arg0: i32) -> (i32, i32, i32, i32) {
    %c0_i32 = arith.constant 0 : i32
    %c0_i32_0 = arith.constant 0 : i32
    %c0_i32_1 = arith.constant 0 : i32
    %c0_i32_2 = arith.constant 0 : i32
    return %arg0, %c0_i32, %c0_i32_0, %c0_i32_1 : i32, i32, i32, i32
  }
  func.func @transform_5(%arg0: i32) -> (i32, i32, i32, i32) {
    %c0_i32 = arith.constant 0 : i32
    %c0_i32_0 = arith.constant 0 : i32
    %c0_i32_1 = arith.constant 0 : i32
    %c0_i32_2 = arith.constant 0 : i32
    return %arg0, %c0_i32, %c0_i32_0, %c0_i32_1 : i32, i32, i32, i32
  }
}

module attributes {stable_mosaic.version = 11 : i64} {
  func.func @_linear_res_ln_kernel(%arg0: i32, %arg1: i32, %arg2: memref<16x32xbf16, #tpu.memory_space<vmem>>, %arg3: memref<32x32xbf16, #tpu.memory_space<vmem>>, %arg4: memref<1x32xf32, #tpu.memory_space<vmem>>, %arg5: memref<16x32xf32, #tpu.memory_space<vmem>>, %arg6: memref<1x32xf32, #tpu.memory_space<vmem>>, %arg7: memref<1x32xf32, #tpu.memory_space<vmem>>, %arg8: memref<16x32xf32, #tpu.memory_space<vmem>>, %arg9: memref<16x32xf32, #tpu.memory_space<vmem>>) attributes {dimension_semantics = [#tpu.dimension_semantics<parallel>, #tpu.dimension_semantics<arbitrary>], iteration_bounds = array<i64: 1, 1>, scalar_prefetch = 0 : i64, scratch_operands = 1 : i64, tpu.core_type = #tpu.core_type<tc>, window_params = [{transform_indices = @transform_0, window_bounds = array<i64: 16, 32>}, {transform_indices = @transform_1, window_bounds = array<i64: 32, 32>}, {pipeline_mode = #tpu.pipeline_mode<synchronous>, transform_indices = @transform_2, window_bounds = array<i64: 1, 32>}, {transform_indices = @transform_3, window_bounds = array<i64: 16, 32>}, {pipeline_mode = #tpu.pipeline_mode<synchronous>, transform_indices = @transform_4, window_bounds = array<i64: 1, 32>}, {pipeline_mode = #tpu.pipeline_mode<synchronous>, transform_indices = @transform_5, window_bounds = array<i64: 1, 32>}, {transform_indices = @transform_6, window_bounds = array<i64: 16, 32>}]} {
    %c0_i32 = arith.constant 0 : i32
    %0 = arith.cmpi eq, %arg1, %c0_i32 : i32
    %1 = arith.extui %0 : i1 to i32
    %c0_i32_0 = arith.constant 0 : i32
    %2 = arith.cmpi ne, %1, %c0_i32_0 : i32
    scf.if %2 {
      %cst_10 = arith.constant 0.000000e+00 : f32
      %12 = vector.broadcast %cst_10 : f32 to vector<16x32xf32>
      %c0_11 = arith.constant 0 : index
      %c0_12 = arith.constant 0 : index
      %13 = vector.load %arg9[%c0_11, %c0_12] : memref<16x32xf32, #tpu.memory_space<vmem>>, vector<16x32xf32>
      tpu.vector_store %arg9[%c0_11, %c0_12], %12 {strides = array<i32>} : memref<16x32xf32, #tpu.memory_space<vmem>>, vector<16x32xf32>,
    } else {
    }
    %c0 = arith.constant 0 : index
    %c0_1 = arith.constant 0 : index
    %3 = vector.load %arg9[%c0, %c0_1] : memref<16x32xf32, #tpu.memory_space<vmem>>, vector<16x32xf32>
    %c0_2 = arith.constant 0 : index
    %c0_3 = arith.constant 0 : index
    %4 = vector.load %arg2[%c0_2, %c0_3] : memref<16x32xbf16, #tpu.memory_space<vmem>>, vector<16x32xbf16>
    %c0_4 = arith.constant 0 : index
    %c0_5 = arith.constant 0 : index
    %5 = vector.load %arg3[%c0_4, %c0_5] : memref<32x32xbf16, #tpu.memory_space<vmem>>, vector<32x32xbf16>
    %cst = arith.constant dense<0.000000e+00> : vector<16x32xf32>
    %6 = tpu.matmul %4, %5, %cst {dimension_numbers = #tpu.dot_dimension_numbers<[1], [0], [0], [1], [0, 0, 1, 1], [], []>} : vector<16x32xbf16>, vector<32x32xbf16>, vector<16x32xf32> -> vector<16x32xf32>
    %7 = arith.addf %3, %6 : vector<16x32xf32>
    %c0_6 = arith.constant 0 : index
    %c0_7 = arith.constant 0 : index
    %8 = vector.load %arg9[%c0_6, %c0_7] : memref<16x32xf32, #tpu.memory_space<vmem>>, vector<16x32xf32>
    tpu.vector_store %arg9[%c0_6, %c0_7], %7 {strides = array<i32>} : memref<16x32xf32, #tpu.memory_space<vmem>>, vector<16x32xf32>,
    %c0_i32_8 = arith.constant 0 : i32
    %9 = arith.cmpi eq, %arg1, %c0_i32_8 : i32
    %10 = arith.extui %9 : i1 to i32
    %c0_i32_9 = arith.constant 0 : i32
    %11 = arith.cmpi ne, %10, %c0_i32_9 : i32
    scf.if %11 {
      %c0_10 = arith.constant 0 : index
      %c0_11 = arith.constant 0 : index
      %12 = vector.load %arg9[%c0_10, %c0_11] : memref<16x32xf32, #tpu.memory_space<vmem>>, vector<16x32xf32>
      %c0_12 = arith.constant 0 : index
      %c0_13 = arith.constant 0 : index
      %13 = vector.load %arg4[%c0_12, %c0_13] : memref<1x32xf32, #tpu.memory_space<vmem>>, vector<1x32xf32>
      %14 = vector.broadcast %13 : vector<1x32xf32> to vector<16x32xf32>
      %15 = arith.addf %12, %14 : vector<16x32xf32>
      %c0_14 = arith.constant 0 : index
      %c0_15 = arith.constant 0 : index
      %16 = vector.load %arg5[%c0_14, %c0_15] : memref<16x32xf32, #tpu.memory_space<vmem>>, vector<16x32xf32>
      %17 = arith.addf %15, %16 : vector<16x32xf32>
      %cst_16 = arith.constant dense<0.000000e+00> : vector<16xf32>
      %18 = vector.multi_reduction <add>, %17, %cst_16 [1] : vector<16x32xf32> to vector<16xf32>
      %19 = vector.shape_cast %18 : vector<16xf32> to vector<16x1xf32>
      %cst_17 = arith.constant 3.200000e+01 : f32
      %20 = vector.broadcast %cst_17 : f32 to vector<16x1xf32>
      %21 = arith.divf %19, %20 : vector<16x1xf32>
      %22 = vector.broadcast %21 : vector<16x1xf32> to vector<16x32xf32>
      %23 = arith.subf %17, %22 : vector<16x32xf32>
      %24 = arith.mulf %23, %23 : vector<16x32xf32>
      %cst_18 = arith.constant dense<0.000000e+00> : vector<16xf32>
      %25 = vector.multi_reduction <add>, %24, %cst_18 [1] : vector<16x32xf32> to vector<16xf32>
      %26 = vector.shape_cast %25 : vector<16xf32> to vector<16x1xf32>
      %cst_19 = arith.constant 3.200000e+01 : f32
      %27 = vector.broadcast %cst_19 : f32 to vector<16x1xf32>
      %28 = arith.divf %26, %27 : vector<16x1xf32>
      %29 = vector.broadcast %21 : vector<16x1xf32> to vector<16x32xf32>
      %30 = arith.subf %17, %29 : vector<16x32xf32>
      %cst_20 = arith.constant 9.99999996E-13 : f32
      %31 = vector.broadcast %cst_20 : f32 to vector<16x1xf32>
      %32 = arith.addf %28, %31 : vector<16x1xf32>
      %33 = math.rsqrt %32 : vector<16x1xf32>
      %34 = vector.broadcast %33 : vector<16x1xf32> to vector<16x32xf32>
      %35 = arith.mulf %30, %34 : vector<16x32xf32>
      %c0_21 = arith.constant 0 : index
      %c0_22 = arith.constant 0 : index
      %36 = vector.load %arg6[%c0_21, %c0_22] : memref<1x32xf32, #tpu.memory_space<vmem>>, vector<1x32xf32>
      %37 = vector.broadcast %36 : vector<1x32xf32> to vector<16x32xf32>
      %38 = arith.mulf %35, %37 : vector<16x32xf32>
      %c0_23 = arith.constant 0 : index
      %c0_24 = arith.constant 0 : index
      %39 = vector.load %arg7[%c0_23, %c0_24] : memref<1x32xf32, #tpu.memory_space<vmem>>, vector<1x32xf32>
      %40 = vector.broadcast %39 : vector<1x32xf32> to vector<16x32xf32>
      %41 = arith.addf %38, %40 : vector<16x32xf32>
      %c0_25 = arith.constant 0 : index
      %c0_26 = arith.constant 0 : index
      %42 = vector.load %arg8[%c0_25, %c0_26] : memref<16x32xf32, #tpu.memory_space<vmem>>, vector<16x32xf32>
      tpu.vector_store %arg8[%c0_25, %c0_26], %41 {strides = array<i32>} : memref<16x32xf32, #tpu.memory_space<vmem>>, vector<16x32xf32>,
    } else {
    }
    return
  }
  func.func @transform_0(%arg0: i32, %arg1: i32) -> (i32, i32) {
    %c0_i32 = arith.constant 0 : i32
    return %arg0, %arg1 : i32, i32
  }
  func.func @transform_1(%arg0: i32, %arg1: i32) -> (i32, i32) {
    %c0_i32 = arith.constant 0 : i32
    %c0_i32_0 = arith.constant 0 : i32
    return %arg1, %c0_i32 : i32, i32
  }
  func.func @transform_2(%arg0: i32, %arg1: i32) -> (i32, i32) {
    %c0_i32 = arith.constant 0 : i32
    %c0_i32_0 = arith.constant 0 : i32
    %c0_i32_1 = arith.constant 0 : i32
    return %c0_i32, %c0_i32_0 : i32, i32
  }
  func.func @transform_3(%arg0: i32, %arg1: i32) -> (i32, i32) {
    %c0_i32 = arith.constant 0 : i32
    %c0_i32_0 = arith.constant 0 : i32
    return %arg0, %c0_i32 : i32, i32
  }
  func.func @transform_4(%arg0: i32, %arg1: i32) -> (i32, i32) {
    %c0_i32 = arith.constant 0 : i32
    %c0_i32_0 = arith.constant 0 : i32
    %c0_i32_1 = arith.constant 0 : i32
    return %c0_i32, %c0_i32_0 : i32, i32
  }
  func.func @transform_5(%arg0: i32, %arg1: i32) -> (i32, i32) {
    %c0_i32 = arith.constant 0 : i32
    %c0_i32_0 = arith.constant 0 : i32
    %c0_i32_1 = arith.constant 0 : i32
    return %c0_i32, %c0_i32_0 : i32, i32
  }
  func.func @transform_6(%arg0: i32, %arg1: i32) -> (i32, i32) {
    %c0_i32 = arith.constant 0 : i32
    %c0_i32_0 = arith.constant 0 : i32
    return %arg0, %c0_i32 : i32, i32
  }
}

module attributes {stable_mosaic.version = 11 : i64} {
  func.func @_linear_gelu_kernel(%arg0: i32, %arg1: i32, %arg2: i32, %arg3: memref<16x32xf32, #tpu.memory_space<vmem>>, %arg4: memref<32x64xbf16, #tpu.memory_space<vmem>>, %arg5: memref<1x64xf32, #tpu.memory_space<vmem>>, %arg6: memref<16x64xbf16, #tpu.memory_space<vmem>>, %arg7: memref<16x64xf32, #tpu.memory_space<vmem>>) attributes {dimension_semantics = [#tpu.dimension_semantics<parallel>, #tpu.dimension_semantics<parallel>, #tpu.dimension_semantics<arbitrary>], iteration_bounds = array<i64: 1, 1, 1>, scalar_prefetch = 0 : i64, scratch_operands = 1 : i64, tpu.core_type = #tpu.core_type<tc>, window_params = [{transform_indices = @transform_0, window_bounds = array<i64: 16, 32>}, {transform_indices = @transform_1, window_bounds = array<i64: 32, 64>}, {transform_indices = @transform_2, window_bounds = array<i64: 1, 64>}, {transform_indices = @transform_3, window_bounds = array<i64: 16, 64>}]} {
    %c0_i32 = arith.constant 0 : i32
    %0 = arith.cmpi eq, %arg2, %c0_i32 : i32
    %1 = arith.extui %0 : i1 to i32
    %c0_i32_0 = arith.constant 0 : i32
    %2 = arith.cmpi ne, %1, %c0_i32_0 : i32
    scf.if %2 {
      %cst_10 = arith.constant 0.000000e+00 : f32
      %13 = vector.broadcast %cst_10 : f32 to vector<16x64xf32>
      %c0_11 = arith.constant 0 : index
      %c0_12 = arith.constant 0 : index
      %14 = vector.load %arg7[%c0_11, %c0_12] : memref<16x64xf32, #tpu.memory_space<vmem>>, vector<16x64xf32>
      tpu.vector_store %arg7[%c0_11, %c0_12], %13 {strides = array<i32>} : memref<16x64xf32, #tpu.memory_space<vmem>>, vector<16x64xf32>,
    } else {
    }
    %c0 = arith.constant 0 : index
    %c0_1 = arith.constant 0 : index
    %3 = vector.load %arg7[%c0, %c0_1] : memref<16x64xf32, #tpu.memory_space<vmem>>, vector<16x64xf32>
    %c0_2 = arith.constant 0 : index
    %c0_3 = arith.constant 0 : index
    %4 = vector.load %arg3[%c0_2, %c0_3] : memref<16x32xf32, #tpu.memory_space<vmem>>, vector<16x32xf32>
    %5 = arith.truncf %4 : vector<16x32xf32> to vector<16x32xbf16>
    %c0_4 = arith.constant 0 : index
    %c0_5 = arith.constant 0 : index
    %6 = vector.load %arg4[%c0_4, %c0_5] : memref<32x64xbf16, #tpu.memory_space<vmem>>, vector<32x64xbf16>
    %cst = arith.constant dense<0.000000e+00> : vector<16x64xf32>
    %7 = tpu.matmul %5, %6, %cst {dimension_numbers = #tpu.dot_dimension_numbers<[1], [0], [0], [1], [0, 0, 1, 1], [], []>} : vector<16x32xbf16>, vector<32x64xbf16>, vector<16x64xf32> -> vector<16x64xf32>
    %8 = arith.addf %3, %7 : vector<16x64xf32>
    %c0_6 = arith.constant 0 : index
    %c0_7 = arith.constant 0 : index
    %9 = vector.load %arg7[%c0_6, %c0_7] : memref<16x64xf32, #tpu.memory_space<vmem>>, vector<16x64xf32>
    tpu.vector_store %arg7[%c0_6, %c0_7], %8 {strides = array<i32>} : memref<16x64xf32, #tpu.memory_space<vmem>>, vector<16x64xf32>,
    %c0_i32_8 = arith.constant 0 : i32
    %10 = arith.cmpi eq, %arg2, %c0_i32_8 : i32
    %11 = arith.extui %10 : i1 to i32
    %c0_i32_9 = arith.constant 0 : i32
    %12 = arith.cmpi ne, %11, %c0_i32_9 : i32
    scf.if %12 {
      %c0_10 = arith.constant 0 : index
      %c0_11 = arith.constant 0 : index
      %13 = vector.load %arg7[%c0_10, %c0_11] : memref<16x64xf32, #tpu.memory_space<vmem>>, vector<16x64xf32>
      %c0_12 = arith.constant 0 : index
      %c0_13 = arith.constant 0 : index
      %14 = vector.load %arg5[%c0_12, %c0_13] : memref<1x64xf32, #tpu.memory_space<vmem>>, vector<1x64xf32>
      %15 = vector.broadcast %14 : vector<1x64xf32> to vector<16x64xf32>
      %16 = arith.addf %13, %15 : vector<16x64xf32>
      %cst_14 = arith.constant 5.000000e-01 : f32
      %17 = vector.broadcast %cst_14 : f32 to vector<16x64xf32>
      %18 = arith.mulf %16, %17 : vector<16x64xf32>
      %cst_15 = arith.constant 0.707106769 : f32
      %19 = vector.broadcast %cst_15 : f32 to vector<16x64xf32>
      %20 = arith.mulf %16, %19 : vector<16x64xf32>
      %21 = math.erf %20 : vector<16x64xf32>
      %cst_16 = arith.constant 1.000000e+00 : f32
      %22 = vector.broadcast %cst_16 : f32 to vector<16x64xf32>
      %23 = arith.addf %22, %21 : vector<16x64xf32>
      %24 = arith.mulf %18, %23 : vector<16x64xf32>
      %25 = arith.truncf %24 : vector<16x64xf32> to vector<16x64xbf16>
      %c0_17 = arith.constant 0 : index
      %c0_18 = arith.constant 0 : index
      %26 = vector.load %arg6[%c0_17, %c0_18] : memref<16x64xbf16, #tpu.memory_space<vmem>>, vector<16x64xbf16>
      tpu.vector_store %arg6[%c0_17, %c0_18], %25 {strides = array<i32>} : memref<16x64xbf16, #tpu.memory_space<vmem>>, vector<16x64xbf16>,
    } else {
    }
    return
  }
  func.func @transform_0(%arg0: i32, %arg1: i32, %arg2: i32) -> (i32, i32) {
    %c0_i32 = arith.constant 0 : i32
    return %arg0, %arg2 : i32, i32
  }
  func.func @transform_1(%arg0: i32, %arg1: i32, %arg2: i32) -> (i32, i32) {
    %c0_i32 = arith.constant 0 : i32
    return %arg2, %arg1 : i32, i32
  }
  func.func @transform_2(%arg0: i32, %arg1: i32, %arg2: i32) -> (i32, i32) {
    %c0_i32 = arith.constant 0 : i32
    %c0_i32_0 = arith.constant 0 : i32
    return %c0_i32, %arg1 : i32, i32
  }
  func.func @transform_3(%arg0: i32, %arg1: i32, %arg2: i32) -> (i32, i32) {
    %c0_i32 = arith.constant 0 : i32
    return %arg0, %arg1 : i32, i32
  }
}

module attributes {stable_mosaic.version = 11 : i64} {
  func.func @_linear_res_ln_kernel(%arg0: i32, %arg1: i32, %arg2: memref<16x64xbf16, #tpu.memory_space<vmem>>, %arg3: memref<64x32xbf16, #tpu.memory_space<vmem>>, %arg4: memref<1x32xf32, #tpu.memory_space<vmem>>, %arg5: memref<16x32xf32, #tpu.memory_space<vmem>>, %arg6: memref<1x32xf32, #tpu.memory_space<vmem>>, %arg7: memref<1x32xf32, #tpu.memory_space<vmem>>, %arg8: memref<16x32xf32, #tpu.memory_space<vmem>>, %arg9: memref<16x32xf32, #tpu.memory_space<vmem>>) attributes {dimension_semantics = [#tpu.dimension_semantics<parallel>, #tpu.dimension_semantics<arbitrary>], iteration_bounds = array<i64: 1, 1>, scalar_prefetch = 0 : i64, scratch_operands = 1 : i64, tpu.core_type = #tpu.core_type<tc>, window_params = [{transform_indices = @transform_0, window_bounds = array<i64: 16, 64>}, {transform_indices = @transform_1, window_bounds = array<i64: 64, 32>}, {pipeline_mode = #tpu.pipeline_mode<synchronous>, transform_indices = @transform_2, window_bounds = array<i64: 1, 32>}, {transform_indices = @transform_3, window_bounds = array<i64: 16, 32>}, {pipeline_mode = #tpu.pipeline_mode<synchronous>, transform_indices = @transform_4, window_bounds = array<i64: 1, 32>}, {pipeline_mode = #tpu.pipeline_mode<synchronous>, transform_indices = @transform_5, window_bounds = array<i64: 1, 32>}, {transform_indices = @transform_6, window_bounds = array<i64: 16, 32>}]} {
    %c0_i32 = arith.constant 0 : i32
    %0 = arith.cmpi eq, %arg1, %c0_i32 : i32
    %1 = arith.extui %0 : i1 to i32
    %c0_i32_0 = arith.constant 0 : i32
    %2 = arith.cmpi ne, %1, %c0_i32_0 : i32
    scf.if %2 {
      %cst_10 = arith.constant 0.000000e+00 : f32
      %12 = vector.broadcast %cst_10 : f32 to vector<16x32xf32>
      %c0_11 = arith.constant 0 : index
      %c0_12 = arith.constant 0 : index
      %13 = vector.load %arg9[%c0_11, %c0_12] : memref<16x32xf32, #tpu.memory_space<vmem>>, vector<16x32xf32>
      tpu.vector_store %arg9[%c0_11, %c0_12], %12 {strides = array<i32>} : memref<16x32xf32, #tpu.memory_space<vmem>>, vector<16x32xf32>,
    } else {
    }
    %c0 = arith.constant 0 : index
    %c0_1 = arith.constant 0 : index
    %3 = vector.load %arg9[%c0, %c0_1] : memref<16x32xf32, #tpu.memory_space<vmem>>, vector<16x32xf32>
    %c0_2 = arith.constant 0 : index
    %c0_3 = arith.constant 0 : index
    %4 = vector.load %arg2[%c0_2, %c0_3] : memref<16x64xbf16, #tpu.memory_space<vmem>>, vector<16x64xbf16>
    %c0_4 = arith.constant 0 : index
    %c0_5 = arith.constant 0 : index
    %5 = vector.load %arg3[%c0_4, %c0_5] : memref<64x32xbf16, #tpu.memory_space<vmem>>, vector<64x32xbf16>
    %cst = arith.constant dense<0.000000e+00> : vector<16x32xf32>
    %6 = tpu.matmul %4, %5, %cst {dimension_numbers = #tpu.dot_dimension_numbers<[1], [0], [0], [1], [0, 0, 1, 1], [], []>} : vector<16x64xbf16>, vector<64x32xbf16>, vector<16x32xf32> -> vector<16x32xf32>
    %7 = arith.addf %3, %6 : vector<16x32xf32>
    %c0_6 = arith.constant 0 : index
    %c0_7 = arith.constant 0 : index
    %8 = vector.load %arg9[%c0_6, %c0_7] : memref<16x32xf32, #tpu.memory_space<vmem>>, vector<16x32xf32>
    tpu.vector_store %arg9[%c0_6, %c0_7], %7 {strides = array<i32>} : memref<16x32xf32, #tpu.memory_space<vmem>>, vector<16x32xf32>,
    %c0_i32_8 = arith.constant 0 : i32
    %9 = arith.cmpi eq, %arg1, %c0_i32_8 : i32
    %10 = arith.extui %9 : i1 to i32
    %c0_i32_9 = arith.constant 0 : i32
    %11 = arith.cmpi ne, %10, %c0_i32_9 : i32
    scf.if %11 {
      %c0_10 = arith.constant 0 : index
      %c0_11 = arith.constant 0 : index
      %12 = vector.load %arg9[%c0_10, %c0_11] : memref<16x32xf32, #tpu.memory_space<vmem>>, vector<16x32xf32>
      %c0_12 = arith.constant 0 : index
      %c0_13 = arith.constant 0 : index
      %13 = vector.load %arg4[%c0_12, %c0_13] : memref<1x32xf32, #tpu.memory_space<vmem>>, vector<1x32xf32>
      %14 = vector.broadcast %13 : vector<1x32xf32> to vector<16x32xf32>
      %15 = arith.addf %12, %14 : vector<16x32xf32>
      %c0_14 = arith.constant 0 : index
      %c0_15 = arith.constant 0 : index
      %16 = vector.load %arg5[%c0_14, %c0_15] : memref<16x32xf32, #tpu.memory_space<vmem>>, vector<16x32xf32>
      %17 = arith.addf %15, %16 : vector<16x32xf32>
      %cst_16 = arith.constant dense<0.000000e+00> : vector<16xf32>
      %18 = vector.multi_reduction <add>, %17, %cst_16 [1] : vector<16x32xf32> to vector<16xf32>
      %19 = vector.shape_cast %18 : vector<16xf32> to vector<16x1xf32>
      %cst_17 = arith.constant 3.200000e+01 : f32
      %20 = vector.broadcast %cst_17 : f32 to vector<16x1xf32>
      %21 = arith.divf %19, %20 : vector<16x1xf32>
      %22 = vector.broadcast %21 : vector<16x1xf32> to vector<16x32xf32>
      %23 = arith.subf %17, %22 : vector<16x32xf32>
      %24 = arith.mulf %23, %23 : vector<16x32xf32>
      %cst_18 = arith.constant dense<0.000000e+00> : vector<16xf32>
      %25 = vector.multi_reduction <add>, %24, %cst_18 [1] : vector<16x32xf32> to vector<16xf32>
      %26 = vector.shape_cast %25 : vector<16xf32> to vector<16x1xf32>
      %cst_19 = arith.constant 3.200000e+01 : f32
      %27 = vector.broadcast %cst_19 : f32 to vector<16x1xf32>
      %28 = arith.divf %26, %27 : vector<16x1xf32>
      %29 = vector.broadcast %21 : vector<16x1xf32> to vector<16x32xf32>
      %30 = arith.subf %17, %29 : vector<16x32xf32>
      %cst_20 = arith.constant 9.99999996E-13 : f32
      %31 = vector.broadcast %cst_20 : f32 to vector<16x1xf32>
      %32 = arith.addf %28, %31 : vector<16x1xf32>
      %33 = math.rsqrt %32 : vector<16x1xf32>
      %34 = vector.broadcast %33 : vector<16x1xf32> to vector<16x32xf32>
      %35 = arith.mulf %30, %34 : vector<16x32xf32>
      %c0_21 = arith.constant 0 : index
      %c0_22 = arith.constant 0 : index
      %36 = vector.load %arg6[%c0_21, %c0_22] : memref<1x32xf32, #tpu.memory_space<vmem>>, vector<1x32xf32>
      %37 = vector.broadcast %36 : vector<1x32xf32> to vector<16x32xf32>
      %38 = arith.mulf %35, %37 : vector<16x32xf32>
      %c0_23 = arith.constant 0 : index
      %c0_24 = arith.constant 0 : index
      %39 = vector.load %arg7[%c0_23, %c0_24] : memref<1x32xf32, #tpu.memory_space<vmem>>, vector<1x32xf32>
      %40 = vector.broadcast %39 : vector<1x32xf32> to vector<16x32xf32>
      %41 = arith.addf %38, %40 : vector<16x32xf32>
      %c0_25 = arith.constant 0 : index
      %c0_26 = arith.constant 0 : index
      %42 = vector.load %arg8[%c0_25, %c0_26] : memref<16x32xf32, #tpu.memory_space<vmem>>, vector<16x32xf32>
      tpu.vector_store %arg8[%c0_25, %c0_26], %41 {strides = array<i32>} : memref<16x32xf32, #tpu.memory_space<vmem>>, vector<16x32xf32>,
    } else {
    }
    return
  }
  func.func @transform_0(%arg0: i32, %arg1: i32) -> (i32, i32) {
    %c0_i32 = arith.constant 0 : i32
    return %arg0, %arg1 : i32, i32
  }
  func.func @transform_1(%arg0: i32, %arg1: i32) -> (i32, i32) {
    %c0_i32 = arith.constant 0 : i32
    %c0_i32_0 = arith.constant 0 : i32
    return %arg1, %c0_i32 : i32, i32
  }
  func.func @transform_2(%arg0: i32, %arg1: i32) -> (i32, i32) {
    %c0_i32 = arith.constant 0 : i32
    %c0_i32_0 = arith.constant 0 : i32
    %c0_i32_1 = arith.constant 0 : i32
    return %c0_i32, %c0_i32_0 : i32, i32
  }
  func.func @transform_3(%arg0: i32, %arg1: i32) -> (i32, i32) {
    %c0_i32 = arith.constant 0 : i32
    %c0_i32_0 = arith.constant 0 : i32
    return %arg0, %c0_i32 : i32, i32
  }
  func.func @transform_4(%arg0: i32, %arg1: i32) -> (i32, i32) {
    %c0_i32 = arith.constant 0 : i32
    %c0_i32_0 = arith.constant 0 : i32
    %c0_i32_1 = arith.constant 0 : i32
    return %c0_i32, %c0_i32_0 : i32, i32
  }
  func.func @transform_5(%arg0: i32, %arg1: i32) -> (i32, i32) {
    %c0_i32 = arith.constant 0 : i32
    %c0_i32_0 = arith.constant 0 : i32
    %c0_i32_1 = arith.constant 0 : i32
    return %c0_i32, %c0_i32_0 : i32, i32
  }
  func.func @transform_6(%arg0: i32, %arg1: i32) -> (i32, i32) {
    %c0_i32 = arith.constant 0 : i32
    %c0_i32_0 = arith.constant 0 : i32
    return %arg0, %c0_i32 : i32, i32
  }
}

</mosaic_0001>

<llo_original>
// kernel: bert_layer_forward.5
$region0: #{bert_layer_forward.5}
  #allocation0 [shape = 'u32[]', space=smem, size = 0x4, offset = 0x4, fixed_abs, tag = 'smem constant byte address 0x4 - core index']
  #allocation1 [shape = 'u32[144,128]{1,0:T(1,128)}', space=vmem, size = 0x12000, scoped, tag = 'internal scratch']
  #allocation2 [shape = 'f32[16,96]{1,0:T(8,128)}', space=vmem, size = 0x2000, scoped, tag = 'scratch operand']
  %s0 = inlined_call_operand.vmem [shape: f32[16,32], index: 0, kind: input, shape index: {}]
  %s1 = inlined_call_operand.vmem [shape: bf16[32,96], index: 1, kind: input, shape index: {}]
  %s2 = inlined_call_operand.hbm [shape: f32[1,96], index: 2, kind: input, shape index: {}]
  %s3 = inlined_call_operand.vmem [shape: bf16[16,96], index: 3, kind: output, shape index: {}]
  %s4 = sld [smem:[#allocation0]]
  $region34: #{bert_layer_forward.5} parent=0
    _
  %s6 = ssub.s32 1, %s4
  %s7 = scalar_select 0, %s6, %s4
  $region1: #{bert_layer_forward.5} parent=0
    #allocation3 [shape = 'u8[512]{0}', space=vmem, size = 0x400, scoped, tag = 'input window, operand 2, single buffered']
    #allocation4 [shape = 's32[1]{0}', space=sflag, size = 0x4, scoped, tag = 'scoped memory for bert_layer_forward.5']
    %8 = vsyncpa [#allocation4], 0
    // Predicated region
    $region2: #{bert_layer_forward.5} parent=1 // pred_check
      _
    $region3: #{bert_layer_forward.5} parent=1 // pred_check_branch
      %10 = sbr.rel (0) target = $region5
    $region4: #{bert_layer_forward.5} parent=1 // pred_region
      _
    $region5: #{bert_layer_forward.5} parent=1 // pred_fallthru
      _
    // Predicated region
    $region6: #{bert_layer_forward.5} parent=1 // pred_check
      _
    $region7: #{bert_layer_forward.5} parent=1 // pred_check_branch
      %12 = sbr.rel (0) target = $region9
    $region8: #{bert_layer_forward.5} parent=1 // pred_region
      _
    $region9: #{bert_layer_forward.5} parent=1 // pred_fallthru
      _
    // Predicated region
    $region10: #{bert_layer_forward.5} parent=1 // pred_check
      _
    $region11: #{bert_layer_forward.5} parent=1 // pred_check_branch
      %14 = sbr.rel (0) target = $region13
    $region12: #{bert_layer_forward.5} parent=1 // pred_region
      %s16 = ssub.s32 16, 16
      %17 = vsyncadd [#allocation4], %s16
      %s19 = sshll.u32 [#allocation3], 4
      %s20 = int_to_ptr.vmem [resolvable:$true] %s19
      %22 = dma.hbm_to_vmem [thread:$0]  %s2, 16, %s20, [#allocation4]
    $region13: #{bert_layer_forward.5} parent=1 // pred_fallthru
      _
    // Predicated region
    $region14: #{bert_layer_forward.5} parent=1 // pred_check
      _
    $region15: #{bert_layer_forward.5} parent=1 // pred_check_branch
      %24 = sbr.rel (0) target = $region17
    $region16: #{bert_layer_forward.5} parent=1 // pred_region
      %25 = dma.done [#allocation4], 16
    $region17: #{bert_layer_forward.5} parent=1 // pred_fallthru
      _
    %p27 = scmp.eq.s32.totalorder 0, 0
    // Predicated region
    $region18: #{bert_layer_forward.5} parent=1 // pred_check
      %p28 = pneg %p27
    $region19: #{bert_layer_forward.5} parent=1 // pred_check_branch
      %30 = sbr.rel (%p28) target = $region21
    $region20: #{bert_layer_forward.5} parent=1 // pred_region
      %vm31 = vcmask 785408
      %32 = vst.msk [vmem:[#allocation2] sm:$0xff] %vm31, 0.0
      %33 = vst.msk [vmem:[#allocation2 + $0x8] sm:$0xff] %vm31, 0.0
    $region21: #{bert_layer_forward.5} parent=1 // pred_fallthru
      _
    %v34 = vld [vmem:[#allocation2] sm:$0xff]
    %v35 = vld [vmem:[#allocation2 + $0x8] sm:$0xff]
    %v36 = vld [vmem:[%s0] sm:$0xff]
    %v37 = vld [vmem:[%s0 + $0x8] sm:$0xff]
    %v38 = vpack.c.bf16 %v37, %v36
    %v39 = vld [vmem:[%s1] sm:$0xf]
    %v40 = vld [vmem:[%s1 + $0x4] sm:$0xf]
    %v41 = vld [vmem:[%s1 + $0x8] sm:$0xf]
    %v42 = vld [vmem:[%s1 + $0xc] sm:$0xf]
    %v47 = vunpack.c.l.b16 %v39
    %v48 = vunpack.c.l.b16 %v40
    %v49 = vunpack.c.l.b16 %v41
    %v50 = vunpack.c.l.b16 %v42
    %v51 = vpack.c.b16 %v48, %v47
    %v52 = vpack.c.b16 %v50, %v49
    %vm55 = vcmask 261120
    %v57 = vsel %vm55, %v38, 0
    %59 = vmatprep.subr.bf16.mxu0 0
    %60 = vmatpush1.bf16.msra.mxu0 0
    %61 = vmatprep.subr.bf16.mxu0 0
    %62 = vmatpush1.bf16.msra.mxu0 0
    %63 = vmatprep.subr.bf16.mxu0 0
    %64 = vmatpush1.bf16.msra.mxu0 0
    %65 = vmatprep.subr.bf16.mxu0 0
    %66 = vmatpush1.bf16.msra.mxu0 0
    %67 = vmatprep.subr.bf16.mxu0 0
    %68 = vmatpush1.bf16.msra.mxu0 0
    %69 = vmatprep.subr.bf16.mxu0 0
    %70 = vmatpush1.bf16.msra.mxu0 0
    %71 = vmatprep.subr.bf16.mxu0 0
    %72 = vmatpush1.bf16.msra.mxu0 %v52
    %73 = vmatprep.subr.bf16.mxu0 0
    %74 = vmatpush1.bf16.msra.mxu0 %v51
    %75 = vmatprep.subr.bf16.mxu0 0
    %76 = vmatpush2.bf16.msra.mxu0 0
    %77 = vmatprep.subr.bf16.mxu0 0
    %78 = vmatpush2.bf16.msra.mxu0 0
    %79 = vmatprep.subr.bf16.mxu0 0
    %80 = vmatpush2.bf16.msra.mxu0 0
    %81 = vmatprep.subr.bf16.mxu0 0
    %82 = vmatpush2.bf16.msra.mxu0 0
    %83 = vmatprep.subr.bf16.mxu0 0
    %84 = vmatpush2.bf16.msra.mxu0 0
    %85 = vmatprep.subr.bf16.mxu0 0
    %86 = vmatpush2.bf16.msra.mxu0 0
    %87 = vmatprep.subr.bf16.mxu0 0
    %88 = vmatpush2.bf16.msra.mxu0 0
    %89 = vmatprep.subr.bf16.mxu0 0
    %90 = vmatpush2.bf16.msra.mxu0 0
    %91 = vmatprep.mubr.bf16.mxu0 0
    %92 = vmatmul.mubr.bf16.gmra.mxu0 %v57
    %v93 = vpop.f32.mrf.mxu0
    %v94 = vadd.f32 0.0, %v93
    %v95 = vpop.f32.mrf.mxu0
    %v96 = vpop.f32.mrf.mxu0
    %v97 = vadd.f32 0.0, %v96
    %v98 = vpop.f32.mrf.mxu0
    %99 = vdwg.mxu0
    %v100 = vadd.f32 %v34, %v94
    %v101 = vadd.f32 %v35, %v97
    %vm102 = vcmask 785408
    %103 = vst.msk [vmem:[#allocation2] sm:$0xff] %vm102, %v100
    %104 = vst.msk [vmem:[#allocation2 + $0x8] sm:$0xff] %vm102, %v101
    // Predicated region
    $region22: #{bert_layer_forward.5} parent=1 // pred_check
      %p105 = pneg %p27
    $region23: #{bert_layer_forward.5} parent=1 // pred_check_branch
      %107 = sbr.rel (%p105) target = $region25
    $region24: #{bert_layer_forward.5} parent=1 // pred_region
      %v108 = vld [vmem:[#allocation2] sm:$0xff]
      %v109 = vld [vmem:[#allocation2 + $0x8] sm:$0xff]
      %v110 = vld [vmem:[#allocation3] sm:$0x1]
      %v112 = vlaneseq
      %v113 = vshrl.u32 %v112, 7
      %v114 = vsub.s32 0, %v113
      %v115 = vrot.slane %v110, %v114
      %v117 = vadd.f32 %v108, %v115
      %v118 = vadd.f32 %v109, %v115
      %v119 = vpack.c.bf16 %v118, %v117
      %v121 = vunpack.c.l.b16 %v119
      %v122 = vunpack.c.h.b16 %v119
      %v123 = vpack.c.b16 %v121, %v121
      %v124 = vpack.c.b16 %v122, %v122
      %vm127 = vcmask 781312
      %128 = vst.msk [vmem:[%s3] sm:$0xf] %vm127, %v123
      %129 = vst.msk [vmem:[%s3 + $0x4] sm:$0xf] %vm127, %v124
    $region25: #{bert_layer_forward.5} parent=1 // pred_fallthru
      _
    // Predicated region
    $region26: #{bert_layer_forward.5} parent=1 // pred_check
      _
    $region27: #{bert_layer_forward.5} parent=1 // pred_check_branch
      %131 = sbr.rel (0) target = $region29
    $region28: #{bert_layer_forward.5} parent=1 // pred_region
      _
    $region29: #{bert_layer_forward.5} parent=1 // pred_fallthru
      _
    // Predicated region
    $region30: #{bert_layer_forward.5} parent=1 // pred_check
      _
    $region31: #{bert_layer_forward.5} parent=1 // pred_check_branch
      %133 = sbr.rel (0) target = $region33
    $region32: #{bert_layer_forward.5} parent=1 // pred_region
      _
    $region33: #{bert_layer_forward.5} parent=1 // pred_fallthru
      _
    %134 = vsyncpa [#allocation4], 1

// kernel: bert_layer_forward.8
$region0: #{bert_layer_forward.8}
  #allocation0 [shape = 'u32[]', space=smem, size = 0x4, offset = 0x4, fixed_abs, tag = 'smem constant byte address 0x4 - core index']
  #allocation1 [shape = 'u32[144,128]{1,0:T(1,128)}', space=vmem, size = 0x12000, scoped, tag = 'internal scratch']
  #allocation2 [shape = 'f32[16,64]{1,0:T(8,128)}', space=vmem, size = 0x2000, scoped, tag = 'scratch operand']
  %s0 = inlined_call_operand.vmem [shape: f32[16,32], index: 0, kind: input, shape index: {}]
  %s1 = inlined_call_operand.vmem [shape: bf16[32,64], index: 1, kind: input, shape index: {}]
  %s2 = inlined_call_operand.vmem [shape: f32[1,64], index: 2, kind: input, shape index: {}]
  %s3 = inlined_call_operand.vmem [shape: bf16[16,64], index: 3, kind: output, shape index: {}]
  %s4 = sld [smem:[#allocation0]]
  $region30: #{bert_layer_forward.8} parent=0
    _
  %s6 = ssub.s32 1, %s4
  %s7 = scalar_select 0, %s6, %s4
  // Predicated region
  $region2: #{bert_layer_forward.8} parent=0 // pred_check
    _
  $region3: #{bert_layer_forward.8} parent=0 // pred_check_branch
    %9 = sbr.rel (0) target = $region5
  $region4: #{bert_layer_forward.8} parent=0 // pred_region
    _
  $region5: #{bert_layer_forward.8} parent=0 // pred_fallthru
    _
  // Predicated region
  $region6: #{bert_layer_forward.8} parent=0 // pred_check
    _
  $region7: #{bert_layer_forward.8} parent=0 // pred_check_branch
    %11 = sbr.rel (0) target = $region9
  $region8: #{bert_layer_forward.8} parent=0 // pred_region
    _
  $region9: #{bert_layer_forward.8} parent=0 // pred_fallthru
    _
  // Predicated region
  $region10: #{bert_layer_forward.8} parent=0 // pred_check
    _
  $region11: #{bert_layer_forward.8} parent=0 // pred_check_branch
    %13 = sbr.rel (0) target = $region13
  $region12: #{bert_layer_forward.8} parent=0 // pred_region
    _
  $region13: #{bert_layer_forward.8} parent=0 // pred_fallthru
    _
  %p15 = scmp.eq.s32.totalorder 0, 0
  // Predicated region
  $region14: #{bert_layer_forward.8} parent=0 // pred_check
    %p16 = pneg %p15
  $region15: #{bert_layer_forward.8} parent=0 // pred_check_branch
    %18 = sbr.rel (%p16) target = $region17
  $region16: #{bert_layer_forward.8} parent=0 // pred_region
    %vm19 = vcmask 523264
    %20 = vst.msk [vmem:[#allocation2] sm:$0xff] %vm19, 0.0
    %21 = vst.msk [vmem:[#allocation2 + $0x8] sm:$0xff] %vm19, 0.0
  $region17: #{bert_layer_forward.8} parent=0 // pred_fallthru
    _
  %v22 = vld [vmem:[#allocation2] sm:$0xff]
  %v23 = vld [vmem:[#allocation2 + $0x8] sm:$0xff]
  %v24 = vld [vmem:[%s0] sm:$0xff]
  %v25 = vld [vmem:[%s0 + $0x8] sm:$0xff]
  %v26 = vpack.c.bf16 %v25, %v24
  %v27 = vld [vmem:[%s1] sm:$0xf]
  %v28 = vld [vmem:[%s1 + $0x4] sm:$0xf]
  %v29 = vld [vmem:[%s1 + $0x8] sm:$0xf]
  %v30 = vld [vmem:[%s1 + $0xc] sm:$0xf]
  %v35 = vunpack.c.l.b16 %v27
  %v36 = vunpack.c.l.b16 %v28
  %v37 = vunpack.c.l.b16 %v29
  %v38 = vunpack.c.l.b16 %v30
  %v39 = vpack.c.b16 %v36, %v35
  %v40 = vpack.c.b16 %v38, %v37
  %vm43 = vcmask 261120
  %v45 = vsel %vm43, %v26, 0
  %47 = vmatprep.subr.bf16.mxu0 0
  %48 = vmatpush1.bf16.msra.mxu0 0
  %49 = vmatprep.subr.bf16.mxu0 0
  %50 = vmatpush1.bf16.msra.mxu0 0
  %51 = vmatprep.subr.bf16.mxu0 0
  %52 = vmatpush1.bf16.msra.mxu0 0
  %53 = vmatprep.subr.bf16.mxu0 0
  %54 = vmatpush1.bf16.msra.mxu0 0
  %55 = vmatprep.subr.bf16.mxu0 0
  %56 = vmatpush1.bf16.msra.mxu0 0
  %57 = vmatprep.subr.bf16.mxu0 0
  %58 = vmatpush1.bf16.msra.mxu0 0
  %59 = vmatprep.subr.bf16.mxu0 0
  %60 = vmatpush1.bf16.msra.mxu0 %v40
  %61 = vmatprep.subr.bf16.mxu0 0
  %62 = vmatpush1.bf16.msra.mxu0 %v39
  %63 = vmatprep.subr.bf16.mxu0 0
  %64 = vmatpush2.bf16.msra.mxu0 0
  %65 = vmatprep.subr.bf16.mxu0 0
  %66 = vmatpush2.bf16.msra.mxu0 0
  %67 = vmatprep.subr.bf16.mxu0 0
  %68 = vmatpush2.bf16.msra.mxu0 0
  %69 = vmatprep.subr.bf16.mxu0 0
  %70 = vmatpush2.bf16.msra.mxu0 0
  %71 = vmatprep.subr.bf16.mxu0 0
  %72 = vmatpush2.bf16.msra.mxu0 0
  %73 = vmatprep.subr.bf16.mxu0 0
  %74 = vmatpush2.bf16.msra.mxu0 0
  %75 = vmatprep.subr.bf16.mxu0 0
  %76 = vmatpush2.bf16.msra.mxu0 0
  %77 = vmatprep.subr.bf16.mxu0 0
  %78 = vmatpush2.bf16.msra.mxu0 0
  %79 = vmatprep.mubr.bf16.mxu0 0
  %80 = vmatmul.mubr.bf16.gmra.mxu0 %v45
  %v81 = vpop.f32.mrf.mxu0
  %v82 = vadd.f32 0.0, %v81
  %v83 = vpop.f32.mrf.mxu0
  %v84 = vpop.f32.mrf.mxu0
  %v85 = vadd.f32 0.0, %v84
  %v86 = vpop.f32.mrf.mxu0
  %87 = vdwg.mxu0
  %v88 = vadd.f32 %v22, %v82
  %v89 = vadd.f32 %v23, %v85
  %vm90 = vcmask 523264
  %91 = vst.msk [vmem:[#allocation2] sm:$0xff] %vm90, %v88
  %92 = vst.msk [vmem:[#allocation2 + $0x8] sm:$0xff] %vm90, %v89
  // Predicated region
  $region18: #{bert_layer_forward.8} parent=0 // pred_check
    %p93 = pneg %p15
  $region19: #{bert_layer_forward.8} parent=0 // pred_check_branch
    %95 = sbr.rel (%p93) target = $region21
  $region20: #{bert_layer_forward.8} parent=0 // pred_region
    %v96 = vld [vmem:[#allocation2] sm:$0xff]
    %v97 = vld [vmem:[#allocation2 + $0x8] sm:$0xff]
    %v98 = vld [vmem:[%s2] sm:$0x1]
    %v100 = vlaneseq
    %v101 = vshrl.u32 %v100, 7
    %v102 = vsub.s32 0, %v101
    %v103 = vrot.slane %v98, %v102
    %v105 = vadd.f32 %v96, %v103
    %v106 = vadd.f32 %v97, %v103
    %v107 = vmul.f32 %v105, 0.5
    %v108 = vmul.f32 %v106, 0.5
    %v109 = vmul.f32 %v105, 0.70710677
    %v110 = vmul.f32 %v106, 0.70710677
    %v111 = verf.f32.pop %v109
    %v112 = verf.f32.pop %v110
    %v113 = vadd.f32 %v111, 1.0
    %v114 = vadd.f32 %v112, 1.0
    %v115 = vmul.f32 %v107, %v113
    %v116 = vmul.f32 %v108, %v114
    %v117 = vpack.c.bf16 %v116, %v115
    %v119 = vunpack.c.l.b16 %v117
    %v120 = vunpack.c.h.b16 %v117
    %v121 = vpack.c.b16 %v119, %v119
    %v122 = vpack.c.b16 %v120, %v120
    %vm125 = vcmask 519168
    %126 = vst.msk [vmem:[%s3] sm:$0xf] %vm125, %v121
    %127 = vst.msk [vmem:[%s3 + $0x4] sm:$0xf] %vm125, %v122
  $region21: #{bert_layer_forward.8} parent=0 // pred_fallthru
    _
  // Predicated region
  $region22: #{bert_layer_forward.8} parent=0 // pred_check
    _
  $region23: #{bert_layer_forward.8} parent=0 // pred_check_branch
    %129 = sbr.rel (0) target = $region25
  $region24: #{bert_layer_forward.8} parent=0 // pred_region
    _
  $region25: #{bert_layer_forward.8} parent=0 // pred_fallthru
    _
  // Predicated region
  $region26: #{bert_layer_forward.8} parent=0 // pred_check
    _
  $region27: #{bert_layer_forward.8} parent=0 // pred_check_branch
    %131 = sbr.rel (0) target = $region29
  $region28: #{bert_layer_forward.8} parent=0 // pred_region
    _
  $region29: #{bert_layer_forward.8} parent=0 // pred_fallthru
    _

// kernel: bert_layer_forward.7
$region0: #{bert_layer_forward.7}
  #allocation0 [shape = 'u32[]', space=smem, size = 0x4, offset = 0x4, fixed_abs, tag = 'smem constant byte address 0x4 - core index']
  #allocation1 [shape = 'u32[144,128]{1,0:T(1,128)}', space=vmem, size = 0x12000, scoped, tag = 'internal scratch']
  #allocation2 [shape = 'f32[16,32]{1,0:T(8,128)}', space=vmem, size = 0x2000, scoped, tag = 'scratch operand']
  %s0 = inlined_call_operand.vmem [shape: bf16[16,32], index: 0, kind: input, shape index: {}]
  %s1 = inlined_call_operand.vmem [shape: bf16[32,32], index: 1, kind: input, shape index: {}]
  %s2 = inlined_call_operand.vmem [shape: f32[1,32], index: 2, kind: input, shape index: {}]
  %s3 = inlined_call_operand.vmem [shape: f32[16,32], index: 3, kind: input, shape index: {}]
  %s4 = inlined_call_operand.vmem [shape: f32[1,32], index: 4, kind: input, shape index: {}]
  %s5 = inlined_call_operand.vmem [shape: f32[1,32], index: 5, kind: input, shape index: {}]
  %s6 = inlined_call_operand.vmem [shape: f32[16,32], index: 6, kind: output, shape index: {}]
  %s7 = sld [smem:[#allocation0]]
  $region42: #{bert_layer_forward.7} parent=0
    _
  %s9 = ssub.s32 1, %s7
  %s10 = scalar_select 0, %s9, %s7
  // Predicated region
  $region2: #{bert_layer_forward.7} parent=0 // pred_check
    _
  $region3: #{bert_layer_forward.7} parent=0 // pred_check_branch
    %12 = sbr.rel (0) target = $region5
  $region4: #{bert_layer_forward.7} parent=0 // pred_region
    _
  $region5: #{bert_layer_forward.7} parent=0 // pred_fallthru
    _
  // Predicated region
  $region6: #{bert_layer_forward.7} parent=0 // pred_check
    _
  $region7: #{bert_layer_forward.7} parent=0 // pred_check_branch
    %14 = sbr.rel (0) target = $region9
  $region8: #{bert_layer_forward.7} parent=0 // pred_region
    _
  $region9: #{bert_layer_forward.7} parent=0 // pred_fallthru
    _
  // Predicated region
  $region10: #{bert_layer_forward.7} parent=0 // pred_check
    _
  $region11: #{bert_layer_forward.7} parent=0 // pred_check_branch
    %16 = sbr.rel (0) target = $region13
  $region12: #{bert_layer_forward.7} parent=0 // pred_region
    _
  $region13: #{bert_layer_forward.7} parent=0 // pred_fallthru
    _
  // Predicated region
  $region14: #{bert_layer_forward.7} parent=0 // pred_check
    _
  $region15: #{bert_layer_forward.7} parent=0 // pred_check_branch
    %18 = sbr.rel (0) target = $region17
  $region16: #{bert_layer_forward.7} parent=0 // pred_region
    _
  $region17: #{bert_layer_forward.7} parent=0 // pred_fallthru
    _
  // Predicated region
  $region18: #{bert_layer_forward.7} parent=0 // pred_check
    _
  $region19: #{bert_layer_forward.7} parent=0 // pred_check_branch
    %20 = sbr.rel (0) target = $region21
  $region20: #{bert_layer_forward.7} parent=0 // pred_region
    _
  $region21: #{bert_layer_forward.7} parent=0 // pred_fallthru
    _
  // Predicated region
  $region22: #{bert_layer_forward.7} parent=0 // pred_check
    _
  $region23: #{bert_layer_forward.7} parent=0 // pred_check_branch
    %22 = sbr.rel (0) target = $region25
  $region24: #{bert_layer_forward.7} parent=0 // pred_region
    _
  $region25: #{bert_layer_forward.7} parent=0 // pred_fallthru
    _
  %p24 = scmp.eq.s32.totalorder 0, 0
  // Predicated region
  $region26: #{bert_layer_forward.7} parent=0 // pred_check
    %p25 = pneg %p24
  $region27: #{bert_layer_forward.7} parent=0 // pred_check_branch
    %27 = sbr.rel (%p25) target = $region29
  $region28: #{bert_layer_forward.7} parent=0 // pred_region
    %vm28 = vcmask 261120
    %29 = vst.msk [vmem:[#allocation2] sm:$0xff] %vm28, 0.0
    %30 = vst.msk [vmem:[#allocation2 + $0x8] sm:$0xff] %vm28, 0.0
  $region29: #{bert_layer_forward.7} parent=0 // pred_fallthru
    _
  %v31 = vld [vmem:[#allocation2] sm:$0xff]
  %v32 = vld [vmem:[#allocation2 + $0x8] sm:$0xff]
  %v33 = vld [vmem:[%s0] sm:$0xf]
  %v34 = vld [vmem:[%s0 + $0x4] sm:$0xf]
  %v35 = vld [vmem:[%s1] sm:$0xf]
  %v36 = vld [vmem:[%s1 + $0x4] sm:$0xf]
  %v37 = vld [vmem:[%s1 + $0x8] sm:$0xf]
  %v38 = vld [vmem:[%s1 + $0xc] sm:$0xf]
  %v41 = vunpack.c.l.b16 %v33
  %v42 = vunpack.c.l.b16 %v34
  %v43 = vpack.c.b16 %v42, %v41
  %v48 = vunpack.c.l.b16 %v35
  %v49 = vunpack.c.l.b16 %v36
  %v50 = vunpack.c.l.b16 %v37
  %v51 = vunpack.c.l.b16 %v38
  %v52 = vpack.c.b16 %v49, %v48
  %v53 = vpack.c.b16 %v51, %v50
  %vm56 = vcmask 261120
  %v58 = vsel %vm56, %v43, 0
  %60 = vmatprep.subr.bf16.mxu0 0
  %61 = vmatpush1.bf16.msra.mxu0 0
  %62 = vmatprep.subr.bf16.mxu0 0
  %63 = vmatpush1.bf16.msra.mxu0 0
  %64 = vmatprep.subr.bf16.mxu0 0
  %65 = vmatpush1.bf16.msra.mxu0 0
  %66 = vmatprep.subr.bf16.mxu0 0
  %67 = vmatpush1.bf16.msra.mxu0 0
  %68 = vmatprep.subr.bf16.mxu0 0
  %69 = vmatpush1.bf16.msra.mxu0 0
  %70 = vmatprep.subr.bf16.mxu0 0
  %71 = vmatpush1.bf16.msra.mxu0 0
  %72 = vmatprep.subr.bf16.mxu0 0
  %73 = vmatpush1.bf16.msra.mxu0 %v53
  %74 = vmatprep.subr.bf16.mxu0 0
  %75 = vmatpush1.bf16.msra.mxu0 %v52
  %76 = vmatprep.subr.bf16.mxu0 0
  %77 = vmatpush2.bf16.msra.mxu0 0
  %78 = vmatprep.subr.bf16.mxu0 0
  %79 = vmatpush2.bf16.msra.mxu0 0
  %80 = vmatprep.subr.bf16.mxu0 0
  %81 = vmatpush2.bf16.msra.mxu0 0
  %82 = vmatprep.subr.bf16.mxu0 0
  %83 = vmatpush2.bf16.msra.mxu0 0
  %84 = vmatprep.subr.bf16.mxu0 0
  %85 = vmatpush2.bf16.msra.mxu0 0
  %86 = vmatprep.subr.bf16.mxu0 0
  %87 = vmatpush2.bf16.msra.mxu0 0
  %88 = vmatprep.subr.bf16.mxu0 0
  %89 = vmatpush2.bf16.msra.mxu0 0
  %90 = vmatprep.subr.bf16.mxu0 0
  %91 = vmatpush2.bf16.msra.mxu0 0
  %92 = vmatprep.mubr.bf16.mxu0 0
  %93 = vmatmul.mubr.bf16.gmra.mxu0 %v58
  %v94 = vpop.f32.mrf.mxu0
  %v95 = vadd.f32 0.0, %v94
  %v96 = vpop.f32.mrf.mxu0
  %v97 = vpop.f32.mrf.mxu0
  %v98 = vadd.f32 0.0, %v97
  %v99 = vpop.f32.mrf.mxu0
  %100 = vdwg.mxu0
  %v101 = vadd.f32 %v31, %v95
  %v102 = vadd.f32 %v32, %v98
  %103 = vst.msk [vmem:[#allocation2] sm:$0xff] %vm56, %v101
  %104 = vst.msk [vmem:[#allocation2 + $0x8] sm:$0xff] %vm56, %v102
  // Predicated region
  $region30: #{bert_layer_forward.7} parent=0 // pred_check
    %p105 = pneg %p24
  $region31: #{bert_layer_forward.7} parent=0 // pred_check_branch
    %107 = sbr.rel (%p105) target = $region33
  $region32: #{bert_layer_forward.7} parent=0 // pred_region
    %v108 = vld [vmem:[#allocation2] sm:$0xff]
    %v109 = vld [vmem:[#allocation2 + $0x8] sm:$0xff]
    %v110 = vld [vmem:[%s2] sm:$0x1]
    %v112 = vlaneseq
    %v113 = vshrl.u32 %v112, 7
    %v114 = vsub.s32 0, %v113
    %v115 = vrot.slane %v110, %v114
    %v117 = vadd.f32 %v108, %v115
    %v118 = vadd.f32 %v109, %v115
    %v119 = vld [vmem:[%s3] sm:$0xff]
    %v120 = vld [vmem:[%s3 + $0x8] sm:$0xff]
    %v121 = vadd.f32 %v117, %v119
    %v122 = vadd.f32 %v118, %v120
    %v123 = vsel %vm56, %v121, 0.0
    %124 = vadd.xlane.f32.xlu0 %v123
    %v125 = vpop.xlane.xlu0 %124
    %v126 = vsel %vm56, %v122, 0.0
    %127 = vadd.xlane.f32.xlu0 %v126
    %v128 = vpop.xlane.xlu0 %127
    %v129 = vrcp.pop 32.0
    %v130 = vmul.f32 %v125, %v129
    %v131 = vmul.f32 %v128, %v129
    %v132 = vsub.f32 %v121, %v130
    %v133 = vsub.f32 %v122, %v131
    %v134 = vmul.f32 %v132, %v132
    %v135 = vmul.f32 %v133, %v133
    %v136 = vsel %vm56, %v134, 0.0
    %137 = vadd.xlane.f32.xlu0 %v136
    %v138 = vpop.xlane.xlu0 %137
    %v139 = vsel %vm56, %v135, 0.0
    %140 = vadd.xlane.f32.xlu0 %v139
    %v141 = vpop.xlane.xlu0 %140
    %v142 = vmul.f32 %v138, %v129
    %v143 = vmul.f32 %v141, %v129
    %v144 = vadd.f32 %v142, 1e-12
    %v145 = vadd.f32 %v143, 1e-12
    %v146 = vrsqrt.pop %v144
    %v147 = vrsqrt.pop %v145
    %v148 = vmul.f32 %v132, %v146
    %v149 = vmul.f32 %v133, %v147
    %v150 = vld [vmem:[%s4] sm:$0x1]
    %v152 = vlaneseq
    %v153 = vshrl.u32 %v152, 7
    %v154 = vsub.s32 0, %v153
    %v155 = vrot.slane %v150, %v154
    %v157 = vmul.f32 %v148, %v155
    %v158 = vmul.f32 %v149, %v155
    %v159 = vld [vmem:[%s5] sm:$0x1]
    %v161 = vlaneseq
    %v162 = vshrl.u32 %v161, 7
    %v163 = vsub.s32 0, %v162
    %v164 = vrot.slane %v159, %v163
    %v166 = vadd.f32 %v157, %v164
    %v167 = vadd.f32 %v158, %v164
    %168 = vst.msk [vmem:[%s6] sm:$0xff] %vm56, %v166
    %169 = vst.msk [vmem:[%s6 + $0x8] sm:$0xff] %vm56, %v167
  $region33: #{bert_layer_forward.7} parent=0 // pred_fallthru
    _
  // Predicated region
  $region34: #{bert_layer_forward.7} parent=0 // pred_check
    _
  $region35: #{bert_layer_forward.7} parent=0 // pred_check_branch
    %171 = sbr.rel (0) target = $region37
  $region36: #{bert_layer_forward.7} parent=0 // pred_region
    _
  $region37: #{bert_layer_forward.7} parent=0 // pred_fallthru
    _
  // Predicated region
  $region38: #{bert_layer_forward.7} parent=0 // pred_check
    _
  $region39: #{bert_layer_forward.7} parent=0 // pred_check_branch
    %173 = sbr.rel (0) target = $region41
  $region40: #{bert_layer_forward.7} parent=0 // pred_region
    _
  $region41: #{bert_layer_forward.7} parent=0 // pred_fallthru
    _

// kernel: bert_layer_forward.6
$region0: #{bert_layer_forward.6}
  #allocation0 [shape = 'u32[]', space=smem, size = 0x4, offset = 0x4, fixed_abs, tag = 'smem constant byte address 0x4 - core index']
  #allocation1 [shape = 'u32[144,128]{1,0:T(1,128)}', space=vmem, size = 0x12000, scoped, tag = 'internal scratch']
  %s0 = inlined_call_operand.vmem [shape: bf16[2,4,8,8], index: 0, kind: input, shape index: {}]
  %s1 = inlined_call_operand.vmem [shape: bf16[2,4,8,8], index: 1, kind: input, shape index: {}]
  %s2 = inlined_call_operand.vmem [shape: bf16[2,4,8,8], index: 2, kind: input, shape index: {}]
  %s3 = inlined_call_operand.vmem [shape: f32[2,1,1,8], index: 3, kind: input, shape index: {}]
  %s4 = inlined_call_operand.hbm [shape: f32[2,4,8,8], index: 4, kind: output, shape index: {0}]
  %s5 = inlined_call_operand.vmem [shape: bf16[2,4,8,8], index: 5, kind: output, shape index: {1}]
  %6 = xla_tuple %s4, %s5
  %s7 = sld [smem:[#allocation0]]
  $region57: #{bert_layer_forward.6} parent=0
    _
  %s9 = ssub.s32 1, %s7
  %s10 = scalar_select 0, %s9, %s7
  $region1: #{bert_layer_forward.6} parent=0
    #allocation2 [shape = 'u8[32768]{0}', space=vmem, size = 0x8000, scoped, tag = 'output window, operand 0']
    #allocation3 [shape = 's32[2]{0}', space=sflag, size = 0x8, scoped, tag = 'scoped memory for bert_layer_forward.6']
    %11 = vsyncpa [#allocation3], 0
    %s12 = scalar_lea.sflag [#allocation3], 1
    %13 = vsyncpa %s12, 0
    loop: start=0, step=1, limit=4
    $region2: #{bert_layer_forward.6} parent=1 // loop_pre_header
      _
    $region3: #{bert_layer_forward.6} parent=1 // loop_header
      %s15 = sphi 0, %s19
      %p16 = scmp.ge.s32.totalorder %s15, 4
      %s25 = sphi 0, %s27
      %s28 = sphi 0, %s25
      %s29 = sphi 0, %s28
      %s45 = sphi 0, %s29
      %s51 = sphi 0, %s53
      %s54 = sphi 0, %s51
      %s55 = sphi 0, %s54
      %s71 = sphi 0, %s55
      %s77 = sphi 0, %s79
      %s80 = sphi 0, %s77
      %s81 = sphi 0, %s80
      %s97 = sphi 0, %s81
      %s103 = sphi 0, %s105
      %s106 = sphi 0, %s103
      %s107 = sphi 0, %s106
      %s123 = sphi 0, %s107
      %s129 = sphi 0, %s131
      %s132 = sphi 0, %s129
      %s133 = sphi 0, %s132
      %s149 = sphi 0, %s133
      %s155 = sphi 0, %s157
      %s158 = sphi 0, %s155
      %s159 = sphi 0, %s158
      %s175 = sphi 0, %s159
    $region4: #{bert_layer_forward.6} parent=1 // loop_header_branch
      %18 = sbr.rel (%p16) target = $region8
    $region5: #{bert_layer_forward.6} parent=1 // loop_body
      %s20 = ssub.s32 %s15, 1
      %s21 = ssub.s32 %s15, 2
      %s22 = sadd.s32 %s15, 1
      %s23 = ssub.s32 %s15, %s22
      %p24 = scmp.eq.s32.totalorder %s23, 0
      %s26 = sadd.s32 %s25, 1
      %s27 = scalar_select %p24, %s25, %s26
      %p30 = pneg %p24
      %p31 = scmp.eq.s32.totalorder %s15, 1
      %p32 = por %p30, %p31
      %p33 = scmp.ne.s32.totalorder %s25, %s28
      %p34 = scmp.eq.s32.totalorder %s15, 0
      %p35 = por %p33, %p34
      %p36 = scmp.ne.s32.totalorder %s25, %s28
      %p37 = scmp.eq.s32.totalorder %s20, 1
      %p38 = por %p36, %p37
      %p39 = scmp.ne.s32.totalorder %s28, %s29
      %p40 = scmp.eq.s32.totalorder %s20, 0
      %p41 = por %p39, %p40
      %p42 = scmp.ne.s32.totalorder %s28, %s29
      %p43 = scmp.eq.s32.totalorder %s21, 1
      %p44 = por %p42, %p43
      %p46 = scmp.ne.s32.totalorder %s29, %s45
      %p47 = scmp.eq.s32.totalorder %s21, 0
      %p48 = por %p46, %p47
      %s49 = ssub.s32 %s15, %s22
      %p50 = scmp.eq.s32.totalorder %s49, 0
      %s52 = sadd.s32 %s51, 1
      %s53 = scalar_select %p50, %s51, %s52
      %p56 = pneg %p50
      %p57 = scmp.eq.s32.totalorder %s15, 1
      %p58 = por %p56, %p57
      %p59 = scmp.ne.s32.totalorder %s51, %s54
      %p60 = scmp.eq.s32.totalorder %s15, 0
      %p61 = por %p59, %p60
      %p62 = scmp.ne.s32.totalorder %s51, %s54
      %p63 = scmp.eq.s32.totalorder %s20, 1
      %p64 = por %p62, %p63
      %p65 = scmp.ne.s32.totalorder %s54, %s55
      %p66 = scmp.eq.s32.totalorder %s20, 0
      %p67 = por %p65, %p66
      %p68 = scmp.ne.s32.totalorder %s54, %s55
      %p69 = scmp.eq.s32.totalorder %s21, 1
      %p70 = por %p68, %p69
      %p72 = scmp.ne.s32.totalorder %s55, %s71
      %p73 = scmp.eq.s32.totalorder %s21, 0
      %p74 = por %p72, %p73
      %s75 = ssub.s32 %s15, %s22
      %p76 = scmp.eq.s32.totalorder %s75, 0
      %s78 = sadd.s32 %s77, 1
      %s79 = scalar_select %p76, %s77, %s78
      %p82 = pneg %p76
      %p83 = scmp.eq.s32.totalorder %s15, 1
      %p84 = por %p82, %p83
      %p85 = scmp.ne.s32.totalorder %s77, %s80
      %p86 = scmp.eq.s32.totalorder %s15, 0
      %p87 = por %p85, %p86
      %p88 = scmp.ne.s32.totalorder %s77, %s80
      %p89 = scmp.eq.s32.totalorder %s20, 1
      %p90 = por %p88, %p89
      %p91 = scmp.ne.s32.totalorder %s80, %s81
      %p92 = scmp.eq.s32.totalorder %s20, 0
      %p93 = por %p91, %p92
      %p94 = scmp.ne.s32.totalorder %s80, %s81
      %p95 = scmp.eq.s32.totalorder %s21, 1
      %p96 = por %p94, %p95
      %p98 = scmp.ne.s32.totalorder %s81, %s97
      %p99 = scmp.eq.s32.totalorder %s21, 0
      %p100 = por %p98, %p99
      %s101 = ssub.s32 %s15, %s22
      %p102 = scmp.eq.s32.totalorder %s101, 0
      %s104 = sadd.s32 %s103, 1
      %s105 = scalar_select %p102, %s103, %s104
      %p108 = pneg %p102
      %p109 = scmp.eq.s32.totalorder %s15, 1
      %p110 = por %p108, %p109
      %p111 = scmp.ne.s32.totalorder %s103, %s106
      %p112 = scmp.eq.s32.totalorder %s15, 0
      %p113 = por %p111, %p112
      %p114 = scmp.ne.s32.totalorder %s103, %s106
      %p115 = scmp.eq.s32.totalorder %s20, 1
      %p116 = por %p114, %p115
      %p117 = scmp.ne.s32.totalorder %s106, %s107
      %p118 = scmp.eq.s32.totalorder %s20, 0
      %p119 = por %p117, %p118
      %p120 = scmp.ne.s32.totalorder %s106, %s107
      %p121 = scmp.eq.s32.totalorder %s21, 1
      %p122 = por %p120, %p121
      %p124 = scmp.ne.s32.totalorder %s107, %s123
      %p125 = scmp.eq.s32.totalorder %s21, 0
      %p126 = por %p124, %p125
      %s127 = ssub.s32 %s15, %s22
      %p128 = scmp.eq.s32.totalorder %s127, 0
      %s130 = sadd.s32 %s129, 1
      %s131 = scalar_select %p128, %s129, %s130
      %p134 = pneg %p128
      %p135 = scmp.eq.s32.totalorder %s15, 1
      %p136 = por %p134, %p135
      %p137 = scmp.ne.s32.totalorder %s129, %s132
      %p138 = scmp.eq.s32.totalorder %s15, 0
      %p139 = por %p137, %p138
      %p140 = scmp.ne.s32.totalorder %s129, %s132
      %p141 = scmp.eq.s32.totalorder %s20, 1
      %p142 = por %p140, %p141
      %p143 = scmp.ne.s32.totalorder %s132, %s133
      %p144 = scmp.eq.s32.totalorder %s20, 0
      %p145 = por %p143, %p144
      %p146 = scmp.ne.s32.totalorder %s132, %s133
      %p147 = scmp.eq.s32.totalorder %s21, 1
      %p148 = por %p146, %p147
      %p150 = scmp.ne.s32.totalorder %s133, %s149
      %p151 = scmp.eq.s32.totalorder %s21, 0
      %p152 = por %p150, %p151
      %s153 = ssub.s32 %s15, %s22
      %p154 = scmp.eq.s32.totalorder %s153, 0
      %s156 = sadd.s32 %s155, 1
      %s157 = scalar_select %p154, %s155, %s156
      %p160 = pneg %p154
      %p161 = scmp.eq.s32.totalorder %s15, 1
      %p162 = por %p160, %p161
      %p163 = scmp.ne.s32.totalorder %s155, %s158
      %p164 = scmp.eq.s32.totalorder %s15, 0
      %p165 = por %p163, %p164
      %p166 = scmp.ne.s32.totalorder %s155, %s158
      %p167 = scmp.eq.s32.totalorder %s20, 1
      %p168 = por %p166, %p167
      %p169 = scmp.ne.s32.totalorder %s158, %s159
      %p170 = scmp.eq.s32.totalorder %s20, 0
      %p171 = por %p169, %p170
      %p172 = scmp.ne.s32.totalorder %s158, %s159
      %p173 = scmp.eq.s32.totalorder %s21, 1
      %p174 = por %p172, %p173
      %p176 = scmp.ne.s32.totalorder %s159, %s175
      %p177 = scmp.eq.s32.totalorder %s21, 0
      %p178 = por %p176, %p177
      %p179 = scmp.le.s32.totalorder 1, %s15
      %p180 = scmp.lt.s32.totalorder %s15, 3
      %p181 = pnand %p179, %p180
      %p182 = pneg %p181
      // Predicated region
      $region9: #{bert_layer_forward.6} parent=5 // pred_check
        _
      $region10: #{bert_layer_forward.6} parent=5 // pred_check_branch
        %184 = sbr.rel (%p181) target = $region12
      $region11: #{bert_layer_forward.6} parent=5 // pred_region
        %s185 = ssub.s32 %s15, 1
      $region12: #{bert_layer_forward.6} parent=5 // pred_fallthru
        _
      %p186 = scmp.lt.s32.totalorder %s15, 2
      // Predicated region
      $region13: #{bert_layer_forward.6} parent=5 // pred_check
        %p187 = pneg %p186
      $region14: #{bert_layer_forward.6} parent=5 // pred_check_branch
        %189 = sbr.rel (%p187) target = $region16
      $region15: #{bert_layer_forward.6} parent=5 // pred_region
        // Predicated region
        $region17: #{bert_layer_forward.6} parent=15 // pred_check
          %p190 = pneg %p35
        $region18: #{bert_layer_forward.6} parent=15 // pred_check_branch
          %192 = sbr.rel (%p190) target = $region20
        $region19: #{bert_layer_forward.6} parent=15 // pred_region
          %p193 = scmp.lt.s32.totalorder %s15, 1
          %s194 = scalar_select %p193, %s15, 1
          %s195 = smul.addr %s194, 4
          %s196 = smul.addr %s195, 4
          %s197 = scalar_lea.vmem %s0, %s196
        $region20: #{bert_layer_forward.6} parent=15 // pred_fallthru
          _
        // Predicated region
        $region21: #{bert_layer_forward.6} parent=15 // pred_check
          %p198 = pneg %p61
        $region22: #{bert_layer_forward.6} parent=15 // pred_check_branch
          %200 = sbr.rel (%p198) target = $region24
        $region23: #{bert_layer_forward.6} parent=15 // pred_region
          %p201 = scmp.lt.s32.totalorder %s15, 1
          %s202 = scalar_select %p201, %s15, 1
          %s203 = smul.addr %s202, 4
          %s204 = smul.addr %s203, 4
          %s205 = scalar_lea.vmem %s1, %s204
        $region24: #{bert_layer_forward.6} parent=15 // pred_fallthru
          _
        // Predicated region
        $region25: #{bert_layer_forward.6} parent=15 // pred_check
          %p206 = pneg %p87
        $region26: #{bert_layer_forward.6} parent=15 // pred_check_branch
          %208 = sbr.rel (%p206) target = $region28
        $region27: #{bert_layer_forward.6} parent=15 // pred_region
          %p209 = scmp.lt.s32.totalorder %s15, 1
          %s210 = scalar_select %p209, %s15, 1
          %s211 = smul.addr %s210, 4
          %s212 = smul.addr %s211, 4
          %s213 = scalar_lea.vmem %s2, %s212
        $region28: #{bert_layer_forward.6} parent=15 // pred_fallthru
          _
        // Predicated region
        $region29: #{bert_layer_forward.6} parent=15 // pred_check
          %p214 = pneg %p113
        $region30: #{bert_layer_forward.6} parent=15 // pred_check_branch
          %216 = sbr.rel (%p214) target = $region32
        $region31: #{bert_layer_forward.6} parent=15 // pred_region
          %p217 = scmp.lt.s32.totalorder %s15, 1
          %s218 = scalar_select %p217, %s15, 1
          %s219 = scalar_lea.vmem %s3, %s218
        $region32: #{bert_layer_forward.6} parent=15 // pred_fallthru
          _
      $region16: #{bert_layer_forward.6} parent=5 // pred_fallthru
        _
      %p220 = scmp.le.s32.totalorder 1, %s15
      %p221 = scmp.lt.s32.totalorder %s15, 3
      %p222 = pnand %p220, %p221
      %p223 = pneg %p222
      // Predicated region
      $region33: #{bert_layer_forward.6} parent=5 // pred_check
        _
      $region34: #{bert_layer_forward.6} parent=5 // pred_check_branch
        %225 = sbr.rel (%p222) target = $region36
      $region35: #{bert_layer_forward.6} parent=5 // pred_region
        %s226 = ssub.s32 %s15, 1
        %p227 = scmp.lt.s32.totalorder %s20, 1
        %s228 = scalar_select %p227, %s20, 1
        %s229 = smul.addr %s228, 4
        %s230 = smul.addr %s229, 4
        %s231 = scalar_lea.vmem %s0, %s230
        %p232 = pneg %p41
        %p233 = pneg %p38
        %p234 = scmp.lt.s32.totalorder %s20, 1
        %s235 = scalar_select %p234, %s20, 1
        %s236 = smul.addr %s235, 4
        %s237 = smul.addr %s236, 4
        %s238 = scalar_lea.vmem %s1, %s237
        %p239 = pneg %p67
        %p240 = pneg %p64
        %p241 = scmp.lt.s32.totalorder %s20, 1
        %s242 = scalar_select %p241, %s20, 1
        %s243 = smul.addr %s242, 4
        %s244 = smul.addr %s243, 4
        %s245 = scalar_lea.vmem %s2, %s244
        %p246 = pneg %p93
        %p247 = pneg %p90
        %p248 = scmp.lt.s32.totalorder %s20, 1
        %s249 = scalar_select %p248, %s20, 1
        %s250 = scalar_lea.vmem %s3, %s249
        %p251 = pneg %p119
        %p252 = pneg %p116
        %p253 = pneg %p145
        %p254 = pneg %p142
        %s255 = sand.u32 %s132, 1
        %s256 = scalar_lea.sflag [#allocation3], %s255
        %s257 = sand.u32 %s132, 1
        %s258 = smul.addr %s257, 32
        %s259 = scalar_lea.vmem [#allocation2], %s258
        %p260 = pneg %p171
        %p261 = pneg %p168
        %p262 = scmp.lt.s32.totalorder %s20, 1
        %s263 = scalar_select %p262, %s20, 1
        %s264 = smul.addr %s263, 4
        %s265 = smul.addr %s264, 4
        %s266 = scalar_lea.vmem %s5, %s265
        %p267 = scmp.lt.s32.totalorder %s20, 1
        %s268 = scalar_select %p267, %s20, 1
        %s269 = smul.addr %s268, 4
        %s270 = smul.addr %s269, 4
        %s271 = scalar_lea.vmem %s0, %s270
        %p272 = scmp.lt.s32.totalorder %s20, 1
        %s273 = scalar_select %p272, %s20, 1
        %s274 = smul.addr %s273, 4
        %s275 = smul.addr %s274, 4
        %s276 = scalar_lea.vmem %s1, %s275
        %p277 = scmp.lt.s32.totalorder %s20, 1
        %s278 = scalar_select %p277, %s20, 1
        %s279 = smul.addr %s278, 4
        %s280 = smul.addr %s279, 4
        %s281 = scalar_lea.vmem %s2, %s280
        %p282 = scmp.lt.s32.totalorder %s20, 1
        %s283 = scalar_select %p282, %s20, 1
        %s284 = scalar_lea.vmem %s3, %s283
        %p285 = scmp.lt.s32.totalorder %s20, 1
        %s286 = scalar_select %p285, %s20, 1
        %s287 = smul.addr %s286, 4
        %s288 = smul.addr %s287, 4
        %s289 = scalar_lea.vmem %s5, %s288
        %v291 = vld [vmem:[%s271] sm:$0xf]
        %v292 = vld [vmem:[%s271 + $0x4] sm:$0xf]
        %v293 = vld [vmem:[%s271 + $0x8] sm:$0xf]
        %v294 = vld [vmem:[%s271 + $0xc] sm:$0xf]
        %v295 = vld [vmem:[%s276] sm:$0xf]
        %v296 = vld [vmem:[%s276 + $0x4] sm:$0xf]
        %v297 = vld [vmem:[%s276 + $0x8] sm:$0xf]
        %v298 = vld [vmem:[%s276 + $0xc] sm:$0xf]
        %v299 = vld [vmem:[%s281] sm:$0xf]
        %v300 = vld [vmem:[%s281 + $0x4] sm:$0xf]
        %v301 = vld [vmem:[%s281 + $0x8] sm:$0xf]
        %v302 = vld [vmem:[%s281 + $0xc] sm:$0xf]
        %v303 = vld [vmem:[%s284] sm:$0x1]
        %vm304 = vcmask 64512
        %v306 = vsel %vm304, %v291, 0
        %v309 = vsel %vm304, %v295, 0
        %311 = vmatprep.subr.bf16.mxu0 0
        %312 = vmatpush1.bf16.xpose.msra.mxu0 0
        %313 = vmatprep.subr.bf16.mxu0 0
        %314 = vmatpush1.bf16.xpose.msra.mxu0 0
        %315 = vmatprep.subr.bf16.mxu0 0
        %316 = vmatpush1.bf16.xpose.msra.mxu0 0
        %317 = vmatprep.subr.bf16.mxu0 0
        %318 = vmatpush1.bf16.xpose.msra.mxu0 0
        %319 = vmatprep.subr.bf16.mxu0 0
        %320 = vmatpush1.bf16.xpose.msra.mxu0 0
        %321 = vmatprep.subr.bf16.mxu0 0
        %322 = vmatpush1.bf16.xpose.msra.mxu0 0
        %323 = vmatprep.subr.bf16.mxu0 0
        %324 = vmatpush1.bf16.xpose.msra.mxu0 0
        %325 = vmatprep.subr.bf16.mxu0 0
        %326 = vmatpush1.bf16.xpose.msra.mxu0 %v309
        %327 = vmatprep.subr.bf16.mxu0 0
        %328 = vmatpush2.bf16.xpose.msra.mxu0 0
        %329 = vmatprep.subr.bf16.mxu0 0
        %330 = vmatpush2.bf16.xpose.msra.mxu0 0
        %331 = vmatprep.subr.bf16.mxu0 0
        %332 = vmatpush2.bf16.xpose.msra.mxu0 0
        %333 = vmatprep.subr.bf16.mxu0 0
        %334 = vmatpush2.bf16.xpose.msra.mxu0 0
        %335 = vmatprep.subr.bf16.mxu0 0
        %336 = vmatpush2.bf16.xpose.msra.mxu0 0
        %337 = vmatprep.subr.bf16.mxu0 0
        %338 = vmatpush2.bf16.xpose.msra.mxu0 0
        %339 = vmatprep.subr.bf16.mxu0 0
        %340 = vmatpush2.bf16.xpose.msra.mxu0 0
        %341 = vmatprep.subr.bf16.mxu0 0
        %342 = vmatpush2.bf16.xpose.msra.mxu0 0
        %343 = vmatprep.mubr.bf16.mxu0 0
        %344 = vmatmul.mubr.bf16.gmra.mxu0 %v306
        %v345 = vpop.f32.mrf.mxu0
        %v346 = vadd.f32 0.0, %v345
        %v347 = vpop.f32.mrf.mxu0
        %v348 = vpop.f32.mrf.mxu0
        %v349 = vpop.f32.mrf.mxu0
        %350 = vdwg.mxu0
        %v352 = vsel %vm304, %v292, 0
        %v355 = vsel %vm304, %v296, 0
        %357 = vmatprep.subr.bf16.mxu0 0
        %358 = vmatpush1.bf16.xpose.msra.mxu0 0
        %359 = vmatprep.subr.bf16.mxu0 0
        %360 = vmatpush1.bf16.xpose.msra.mxu0 0
        %361 = vmatprep.subr.bf16.mxu0 0
        %362 = vmatpush1.bf16.xpose.msra.mxu0 0
        %363 = vmatprep.subr.bf16.mxu0 0
        %364 = vmatpush1.bf16.xpose.msra.mxu0 0
        %365 = vmatprep.subr.bf16.mxu0 0
        %366 = vmatpush1.bf16.xpose.msra.mxu0 0
        %367 = vmatprep.subr.bf16.mxu0 0
        %368 = vmatpush1.bf16.xpose.msra.mxu0 0
        %369 = vmatprep.subr.bf16.mxu0 0
        %370 = vmatpush1.bf16.xpose.msra.mxu0 0
        %371 = vmatprep.subr.bf16.mxu0 0
        %372 = vmatpush1.bf16.xpose.msra.mxu0 %v355
        %373 = vmatprep.subr.bf16.mxu0 0
        %374 = vmatpush2.bf16.xpose.msra.mxu0 0
        %375 = vmatprep.subr.bf16.mxu0 0
        %376 = vmatpush2.bf16.xpose.msra.mxu0 0
        %377 = vmatprep.subr.bf16.mxu0 0
        %378 = vmatpush2.bf16.xpose.msra.mxu0 0
        %379 = vmatprep.subr.bf16.mxu0 0
        %380 = vmatpush2.bf16.xpose.msra.mxu0 0
        %381 = vmatprep.subr.bf16.mxu0 0
        %382 = vmatpush2.bf16.xpose.msra.mxu0 0
        %383 = vmatprep.subr.bf16.mxu0 0
        %384 = vmatpush2.bf16.xpose.msra.mxu0 0
        %385 = vmatprep.subr.bf16.mxu0 0
        %386 = vmatpush2.bf16.xpose.msra.mxu0 0
        %387 = vmatprep.subr.bf16.mxu0 0
        %388 = vmatpush2.bf16.xpose.msra.mxu0 0
        %389 = vmatprep.mubr.bf16.mxu0 0
        %390 = vmatmul.mubr.bf16.gmra.mxu0 %v352
        %v391 = vpop.f32.mrf.mxu0
        %v392 = vadd.f32 0.0, %v391
        %v393 = vpop.f32.mrf.mxu0
        %v394 = vpop.f32.mrf.mxu0
        %v395 = vpop.f32.mrf.mxu0
        %396 = vdwg.mxu0
        %v398 = vsel %vm304, %v293, 0
        %v401 = vsel %vm304, %v297, 0
        %403 = vmatprep.subr.bf16.mxu0 0
        %404 = vmatpush1.bf16.xpose.msra.mxu0 0
        %405 = vmatprep.subr.bf16.mxu0 0
        %406 = vmatpush1.bf16.xpose.msra.mxu0 0
        %407 = vmatprep.subr.bf16.mxu0 0
        %408 = vmatpush1.bf16.xpose.msra.mxu0 0
        %409 = vmatprep.subr.bf16.mxu0 0
        %410 = vmatpush1.bf16.xpose.msra.mxu0 0
        %411 = vmatprep.subr.bf16.mxu0 0
        %412 = vmatpush1.bf16.xpose.msra.mxu0 0
        %413 = vmatprep.subr.bf16.mxu0 0
        %414 = vmatpush1.bf16.xpose.msra.mxu0 0
        %415 = vmatprep.subr.bf16.mxu0 0
        %416 = vmatpush1.bf16.xpose.msra.mxu0 0
        %417 = vmatprep.subr.bf16.mxu0 0
        %418 = vmatpush1.bf16.xpose.msra.mxu0 %v401
        %419 = vmatprep.subr.bf16.mxu0 0
        %420 = vmatpush2.bf16.xpose.msra.mxu0 0
        %421 = vmatprep.subr.bf16.mxu0 0
        %422 = vmatpush2.bf16.xpose.msra.mxu0 0
        %423 = vmatprep.subr.bf16.mxu0 0
        %424 = vmatpush2.bf16.xpose.msra.mxu0 0
        %425 = vmatprep.subr.bf16.mxu0 0
        %426 = vmatpush2.bf16.xpose.msra.mxu0 0
        %427 = vmatprep.subr.bf16.mxu0 0
        %428 = vmatpush2.bf16.xpose.msra.mxu0 0
        %429 = vmatprep.subr.bf16.mxu0 0
        %430 = vmatpush2.bf16.xpose.msra.mxu0 0
        %431 = vmatprep.subr.bf16.mxu0 0
        %432 = vmatpush2.bf16.xpose.msra.mxu0 0
        %433 = vmatprep.subr.bf16.mxu0 0
        %434 = vmatpush2.bf16.xpose.msra.mxu0 0
        %435 = vmatprep.mubr.bf16.mxu0 0
        %436 = vmatmul.mubr.bf16.gmra.mxu0 %v398
        %v437 = vpop.f32.mrf.mxu0
        %v438 = vadd.f32 0.0, %v437
        %v439 = vpop.f32.mrf.mxu0
        %v440 = vpop.f32.mrf.mxu0
        %v441 = vpop.f32.mrf.mxu0
        %442 = vdwg.mxu0
        %v444 = vsel %vm304, %v294, 0
        %v447 = vsel %vm304, %v298, 0
        %449 = vmatprep.subr.bf16.mxu0 0
        %450 = vmatpush1.bf16.xpose.msra.mxu0 0
        %451 = vmatprep.subr.bf16.mxu0 0
        %452 = vmatpush1.bf16.xpose.msra.mxu0 0
        %453 = vmatprep.subr.bf16.mxu0 0
        %454 = vmatpush1.bf16.xpose.msra.mxu0 0
        %455 = vmatprep.subr.bf16.mxu0 0
        %456 = vmatpush1.bf16.xpose.msra.mxu0 0
        %457 = vmatprep.subr.bf16.mxu0 0
        %458 = vmatpush1.bf16.xpose.msra.mxu0 0
        %459 = vmatprep.subr.bf16.mxu0 0
        %460 = vmatpush1.bf16.xpose.msra.mxu0 0
        %461 = vmatprep.subr.bf16.mxu0 0
        %462 = vmatpush1.bf16.xpose.msra.mxu0 0
        %463 = vmatprep.subr.bf16.mxu0 0
        %464 = vmatpush1.bf16.xpose.msra.mxu0 %v447
        %465 = vmatprep.subr.bf16.mxu0 0
        %466 = vmatpush2.bf16.xpose.msra.mxu0 0
        %467 = vmatprep.subr.bf16.mxu0 0
        %468 = vmatpush2.bf16.xpose.msra.mxu0 0
        %469 = vmatprep.subr.bf16.mxu0 0
        %470 = vmatpush2.bf16.xpose.msra.mxu0 0
        %471 = vmatprep.subr.bf16.mxu0 0
        %472 = vmatpush2.bf16.xpose.msra.mxu0 0
        %473 = vmatprep.subr.bf16.mxu0 0
        %474 = vmatpush2.bf16.xpose.msra.mxu0 0
        %475 = vmatprep.subr.bf16.mxu0 0
        %476 = vmatpush2.bf16.xpose.msra.mxu0 0
        %477 = vmatprep.subr.bf16.mxu0 0
        %478 = vmatpush2.bf16.xpose.msra.mxu0 0
        %479 = vmatprep.subr.bf16.mxu0 0
        %480 = vmatpush2.bf16.xpose.msra.mxu0 0
        %481 = vmatprep.mubr.bf16.mxu0 0
        %482 = vmatmul.mubr.bf16.gmra.mxu0 %v444
        %v483 = vpop.f32.mrf.mxu0
        %v484 = vadd.f32 0.0, %v483
        %v485 = vpop.f32.mrf.mxu0
        %v486 = vpop.f32.mrf.mxu0
        %v487 = vpop.f32.mrf.mxu0
        %488 = vdwg.mxu0
        %v489 = vmul.f32 %v346, 0.35355338
        %v490 = vmul.f32 %v392, 0.35355338
        %v491 = vmul.f32 %v438, 0.35355338
        %v492 = vmul.f32 %v484, 0.35355338
        %v494 = vlaneseq
        %v495 = vshrl.u32 %v494, 7
        %v496 = vsub.s32 0, %v495
        %v497 = vrot.slane %v303, %v496
        %v499 = vadd.f32 %v489, %v497
        %v500 = vadd.f32 %v490, %v497
        %v501 = vadd.f32 %v491, %v497
        %v502 = vadd.f32 %v492, %v497
        %503 = vst.msk [vmem:[%s259] sm:$0xff] %vm304, %v499
        %504 = vst.msk [vmem:[%s259 + $0x8] sm:$0xff] %vm304, %v500
        %505 = vst.msk [vmem:[%s259 + $0x10] sm:$0xff] %vm304, %v501
        %506 = vst.msk [vmem:[%s259 + $0x18] sm:$0xff] %vm304, %v502
        %v507 = vsel %vm304, %v499, -inf
        %508 = vmax.xlane.f32.xlu0 %v507
        %v509 = vpop.xlane.xlu0 %508
        %v510 = vsel %vm304, %v500, -inf
        %511 = vmax.xlane.f32.xlu0 %v510
        %v512 = vpop.xlane.xlu0 %511
        %v513 = vsel %vm304, %v501, -inf
        %514 = vmax.xlane.f32.xlu0 %v513
        %v515 = vpop.xlane.xlu0 %514
        %v516 = vsel %vm304, %v502, -inf
        %517 = vmax.xlane.f32.xlu0 %v516
        %v518 = vpop.xlane.xlu0 %517
        %v519 = vsub.f32 %v499, %v509
        %v520 = vsub.f32 %v500, %v512
        %v521 = vsub.f32 %v501, %v515
        %v522 = vsub.f32 %v502, %v518
        %v523 = vmul.f32 %v519, 1.442695
        %v524 = vpow.pop %v523
        %v525 = vmul.f32 %v520, 1.442695
        %v526 = vpow.pop %v525
        %v527 = vmul.f32 %v521, 1.442695
        %v528 = vpow.pop %v527
        %v529 = vmul.f32 %v522, 1.442695
        %v530 = vpow.pop %v529
        %v531 = vsel %vm304, %v524, 0.0
        %532 = vadd.xlane.f32.xlu0 %v531
        %v533 = vpop.xlane.xlu0 %532
        %v534 = vsel %vm304, %v526, 0.0
        %535 = vadd.xlane.f32.xlu0 %v534
        %v536 = vpop.xlane.xlu0 %535
        %v537 = vsel %vm304, %v528, 0.0
        %538 = vadd.xlane.f32.xlu0 %v537
        %v539 = vpop.xlane.xlu0 %538
        %v540 = vsel %vm304, %v530, 0.0
        %541 = vadd.xlane.f32.xlu0 %v540
        %v542 = vpop.xlane.xlu0 %541
        %v543 = vrcp.pop %v533
        %v544 = vrcp.pop %v536
        %v545 = vrcp.pop %v539
        %v546 = vrcp.pop %v542
        %v547 = vmul.f32 %v524, %v543
        %v548 = vmul.f32 %v526, %v544
        %v549 = vmul.f32 %v528, %v545
        %v550 = vmul.f32 %v530, %v546
        %v551 = vpack.c.bf16 %v547, %v547
        %v552 = vpack.c.bf16 %v548, %v548
        %v553 = vpack.c.bf16 %v549, %v549
        %v554 = vpack.c.bf16 %v550, %v550
        %v556 = vsel %vm304, %v551, 0
        %vm558 = vcmask 1043456
        %v560 = vsel %vm558, %v299, 0
        %562 = vmatprep.subr.bf16.mxu0 0
        %563 = vmatpush1.bf16.msra.mxu0 0
        %564 = vmatprep.subr.bf16.mxu0 0
        %565 = vmatpush1.bf16.msra.mxu0 0
        %566 = vmatprep.subr.bf16.mxu0 0
        %567 = vmatpush1.bf16.msra.mxu0 0
        %568 = vmatprep.subr.bf16.mxu0 0
        %569 = vmatpush1.bf16.msra.mxu0 0
        %570 = vmatprep.subr.bf16.mxu0 0
        %571 = vmatpush1.bf16.msra.mxu0 0
        %572 = vmatprep.subr.bf16.mxu0 0
        %573 = vmatpush1.bf16.msra.mxu0 0
        %574 = vmatprep.subr.bf16.mxu0 0
        %575 = vmatpush1.bf16.msra.mxu0 0
        %576 = vmatprep.subr.bf16.mxu0 0
        %577 = vmatpush1.bf16.msra.mxu0 %v560
        %578 = vmatprep.subr.bf16.mxu0 0
        %579 = vmatpush2.bf16.msra.mxu0 0
        %580 = vmatprep.subr.bf16.mxu0 0
        %581 = vmatpush2.bf16.msra.mxu0 0
        %582 = vmatprep.subr.bf16.mxu0 0
        %583 = vmatpush2.bf16.msra.mxu0 0
        %584 = vmatprep.subr.bf16.mxu0 0
        %585 = vmatpush2.bf16.msra.mxu0 0
        %586 = vmatprep.subr.bf16.mxu0 0
        %587 = vmatpush2.bf16.msra.mxu0 0
        %588 = vmatprep.subr.bf16.mxu0 0
        %589 = vmatpush2.bf16.msra.mxu0 0
        %590 = vmatprep.subr.bf16.mxu0 0
        %591 = vmatpush2.bf16.msra.mxu0 0
        %592 = vmatprep.subr.bf16.mxu0 0
        %593 = vmatpush2.bf16.msra.mxu0 0
        %594 = vmatprep.mubr.bf16.mxu0 0
        %595 = vmatmul.mubr.bf16.gmra.mxu0 %v556
        %v596 = vpop.f32.mrf.mxu0
        %v597 = vadd.f32 0.0, %v596
        %v598 = vpop.f32.mrf.mxu0
        %v599 = vpop.f32.mrf.mxu0
        %v600 = vpop.f32.mrf.mxu0
        %601 = vdwg.mxu0
        %v603 = vsel %vm304, %v552, 0
        %v606 = vsel %vm558, %v300, 0
        %608 = vmatprep.subr.bf16.mxu0 0
        %609 = vmatpush1.bf16.msra.mxu0 0
        %610 = vmatprep.subr.bf16.mxu0 0
        %611 = vmatpush1.bf16.msra.mxu0 0
        %612 = vmatprep.subr.bf16.mxu0 0
        %613 = vmatpush1.bf16.msra.mxu0 0
        %614 = vmatprep.subr.bf16.mxu0 0
        %615 = vmatpush1.bf16.msra.mxu0 0
        %616 = vmatprep.subr.bf16.mxu0 0
        %617 = vmatpush1.bf16.msra.mxu0 0
        %618 = vmatprep.subr.bf16.mxu0 0
        %619 = vmatpush1.bf16.msra.mxu0 0
        %620 = vmatprep.subr.bf16.mxu0 0
        %621 = vmatpush1.bf16.msra.mxu0 0
        %622 = vmatprep.subr.bf16.mxu0 0
        %623 = vmatpush1.bf16.msra.mxu0 %v606
        %624 = vmatprep.subr.bf16.mxu0 0
        %625 = vmatpush2.bf16.msra.mxu0 0
        %626 = vmatprep.subr.bf16.mxu0 0
        %627 = vmatpush2.bf16.msra.mxu0 0
        %628 = vmatprep.subr.bf16.mxu0 0
        %629 = vmatpush2.bf16.msra.mxu0 0
        %630 = vmatprep.subr.bf16.mxu0 0
        %631 = vmatpush2.bf16.msra.mxu0 0
        %632 = vmatprep.subr.bf16.mxu0 0
        %633 = vmatpush2.bf16.msra.mxu0 0
        %634 = vmatprep.subr.bf16.mxu0 0
        %635 = vmatpush2.bf16.msra.mxu0 0
        %636 = vmatprep.subr.bf16.mxu0 0
        %637 = vmatpush2.bf16.msra.mxu0 0
        %638 = vmatprep.subr.bf16.mxu0 0
        %639 = vmatpush2.bf16.msra.mxu0 0
        %640 = vmatprep.mubr.bf16.mxu0 0
        %641 = vmatmul.mubr.bf16.gmra.mxu0 %v603
        %v642 = vpop.f32.mrf.mxu0
        %v643 = vadd.f32 0.0, %v642
        %v644 = vpop.f32.mrf.mxu0
        %v645 = vpop.f32.mrf.mxu0
        %v646 = vpop.f32.mrf.mxu0
        %647 = vdwg.mxu0
        %v649 = vsel %vm304, %v553, 0
        %v652 = vsel %vm558, %v301, 0
        %654 = vmatprep.subr.bf16.mxu0 0
        %655 = vmatpush1.bf16.msra.mxu0 0
        %656 = vmatprep.subr.bf16.mxu0 0
        %657 = vmatpush1.bf16.msra.mxu0 0
        %658 = vmatprep.subr.bf16.mxu0 0
        %659 = vmatpush1.bf16.msra.mxu0 0
        %660 = vmatprep.subr.bf16.mxu0 0
        %661 = vmatpush1.bf16.msra.mxu0 0
        %662 = vmatprep.subr.bf16.mxu0 0
        %663 = vmatpush1.bf16.msra.mxu0 0
        %664 = vmatprep.subr.bf16.mxu0 0
        %665 = vmatpush1.bf16.msra.mxu0 0
        %666 = vmatprep.subr.bf16.mxu0 0
        %667 = vmatpush1.bf16.msra.mxu0 0
        %668 = vmatprep.subr.bf16.mxu0 0
        %669 = vmatpush1.bf16.msra.mxu0 %v652
        %670 = vmatprep.subr.bf16.mxu0 0
        %671 = vmatpush2.bf16.msra.mxu0 0
        %672 = vmatprep.subr.bf16.mxu0 0
        %673 = vmatpush2.bf16.msra.mxu0 0
        %674 = vmatprep.subr.bf16.mxu0 0
        %675 = vmatpush2.bf16.msra.mxu0 0
        %676 = vmatprep.subr.bf16.mxu0 0
        %677 = vmatpush2.bf16.msra.mxu0 0
        %678 = vmatprep.subr.bf16.mxu0 0
        %679 = vmatpush2.bf16.msra.mxu0 0
        %680 = vmatprep.subr.bf16.mxu0 0
        %681 = vmatpush2.bf16.msra.mxu0 0
        %682 = vmatprep.subr.bf16.mxu0 0
        %683 = vmatpush2.bf16.msra.mxu0 0
        %684 = vmatprep.subr.bf16.mxu0 0
        %685 = vmatpush2.bf16.msra.mxu0 0
        %686 = vmatprep.mubr.bf16.mxu0 0
        %687 = vmatmul.mubr.bf16.gmra.mxu0 %v649
        %v688 = vpop.f32.mrf.mxu0
        %v689 = vadd.f32 0.0, %v688
        %v690 = vpop.f32.mrf.mxu0
        %v691 = vpop.f32.mrf.mxu0
        %v692 = vpop.f32.mrf.mxu0
        %693 = vdwg.mxu0
        %v695 = vsel %vm304, %v554, 0
        %v698 = vsel %vm558, %v302, 0
        %700 = vmatprep.subr.bf16.mxu0 0
        %701 = vmatpush1.bf16.msra.mxu0 0
        %702 = vmatprep.subr.bf16.mxu0 0
        %703 = vmatpush1.bf16.msra.mxu0 0
        %704 = vmatprep.subr.bf16.mxu0 0
        %705 = vmatpush1.bf16.msra.mxu0 0
        %706 = vmatprep.subr.bf16.mxu0 0
        %707 = vmatpush1.bf16.msra.mxu0 0
        %708 = vmatprep.subr.bf16.mxu0 0
        %709 = vmatpush1.bf16.msra.mxu0 0
        %710 = vmatprep.subr.bf16.mxu0 0
        %711 = vmatpush1.bf16.msra.mxu0 0
        %712 = vmatprep.subr.bf16.mxu0 0
        %713 = vmatpush1.bf16.msra.mxu0 0
        %714 = vmatprep.subr.bf16.mxu0 0
        %715 = vmatpush1.bf16.msra.mxu0 %v698
        %716 = vmatprep.subr.bf16.mxu0 0
        %717 = vmatpush2.bf16.msra.mxu0 0
        %718 = vmatprep.subr.bf16.mxu0 0
        %719 = vmatpush2.bf16.msra.mxu0 0
        %720 = vmatprep.subr.bf16.mxu0 0
        %721 = vmatpush2.bf16.msra.mxu0 0
        %722 = vmatprep.subr.bf16.mxu0 0
        %723 = vmatpush2.bf16.msra.mxu0 0
        %724 = vmatprep.subr.bf16.mxu0 0
        %725 = vmatpush2.bf16.msra.mxu0 0
        %726 = vmatprep.subr.bf16.mxu0 0
        %727 = vmatpush2.bf16.msra.mxu0 0
        %728 = vmatprep.subr.bf16.mxu0 0
        %729 = vmatpush2.bf16.msra.mxu0 0
        %730 = vmatprep.subr.bf16.mxu0 0
        %731 = vmatpush2.bf16.msra.mxu0 0
        %732 = vmatprep.mubr.bf16.mxu0 0
        %733 = vmatmul.mubr.bf16.gmra.mxu0 %v695
        %v734 = vpop.f32.mrf.mxu0
        %v735 = vadd.f32 0.0, %v734
        %v736 = vpop.f32.mrf.mxu0
        %v737 = vpop.f32.mrf.mxu0
        %v738 = vpop.f32.mrf.mxu0
        %739 = vdwg.mxu0
        %v740 = vpack.c.bf16 %v597, %v597
        %v741 = vpack.c.bf16 %v643, %v643
        %v742 = vpack.c.bf16 %v689, %v689
        %v743 = vpack.c.bf16 %v735, %v735
        %vm744 = vcmask 60416
        %745 = vst.msk [vmem:[%s289] sm:$0xf] %vm744, %v740
        %746 = vst.msk [vmem:[%s289 + $0x4] sm:$0xf] %vm744, %v741
        %747 = vst.msk [vmem:[%s289 + $0x8] sm:$0xf] %vm744, %v742
        %748 = vst.msk [vmem:[%s289 + $0xc] sm:$0xf] %vm744, %v743
        %s749 = sand.u32 %s132, 1
        %s750 = scalar_lea.sflag [#allocation3], %s749
        %s751 = sand.u32 %s132, 1
        %s752 = smul.addr %s751, 32
        %s753 = scalar_lea.vmem [#allocation2], %s752
        %p754 = scmp.lt.s32.totalorder %s20, 1
        %s755 = scalar_select %p754, %s20, 1
        %s756 = smul.addr %s755, 4
        %s757 = smul.addr %s756, 4
        %s758 = scalar_lea.vmem %s5, %s757
        // Predicated region
        $region37: #{bert_layer_forward.6} parent=35 // pred_check
          %p759 = pneg %p142
        $region38: #{bert_layer_forward.6} parent=35 // pred_check_branch
          %761 = sbr.rel (%p759) target = $region40
        $region39: #{bert_layer_forward.6} parent=35 // pred_region
          %s763 = ssub.s32 512, 512
          %764 = vsyncadd %s750, %s763
          %s765 = smul.addr %s20, 4
          %s766 = smul.addr %s765, 128
          %s767 = scalar_lea.hbm %s4, %s766
          %s768 = sshll.u32 %s753, 4
          %s769 = int_to_ptr.vmem [resolvable:$true] %s768
          %774 = dma.vmem_to_hbm [thread:$0]  %s769, 512, %s767, %s750, 128, 128, 8
        $region40: #{bert_layer_forward.6} parent=35 // pred_fallthru
          _
        // Predicated region
        $region41: #{bert_layer_forward.6} parent=35 // pred_check
          %p775 = pneg %p168
        $region42: #{bert_layer_forward.6} parent=35 // pred_check_branch
          %777 = sbr.rel (%p775) target = $region44
        $region43: #{bert_layer_forward.6} parent=35 // pred_region
          _
        $region44: #{bert_layer_forward.6} parent=35 // pred_fallthru
          _
      $region36: #{bert_layer_forward.6} parent=5 // pred_fallthru
        _
      %p778 = scmp.le.s32.totalorder 2, %s15
      // Predicated region
      $region45: #{bert_layer_forward.6} parent=5 // pred_check
        %p779 = pneg %p778
      $region46: #{bert_layer_forward.6} parent=5 // pred_check_branch
        %781 = sbr.rel (%p779) target = $region48
      $region47: #{bert_layer_forward.6} parent=5 // pred_region
        %s782 = ssub.s32 %s15, 2
        // Predicated region
        $region49: #{bert_layer_forward.6} parent=47 // pred_check
          %p783 = pneg %p148
        $region50: #{bert_layer_forward.6} parent=47 // pred_check_branch
          %785 = sbr.rel (%p783) target = $region52
        $region51: #{bert_layer_forward.6} parent=47 // pred_region
          %s786 = sand.u32 %s133, 1
          %s787 = scalar_lea.sflag [#allocation3], %s786
          %s788 = sand.u32 %s133, 1
          %s789 = smul.addr %s788, 32
          %s790 = scalar_lea.vmem [#allocation2], %s789
          %791 = dma.done %s787, 512
        $region52: #{bert_layer_forward.6} parent=47 // pred_fallthru
          _
        // Predicated region
        $region53: #{bert_layer_forward.6} parent=47 // pred_check
          %p792 = pneg %p174
        $region54: #{bert_layer_forward.6} parent=47 // pred_check_branch
          %794 = sbr.rel (%p792) target = $region56
        $region55: #{bert_layer_forward.6} parent=47 // pred_region
          %p795 = scmp.lt.s32.totalorder %s21, 1
          %s796 = scalar_select %p795, %s21, 1
          %s797 = smul.addr %s796, 4
          %s798 = smul.addr %s797, 4
          %s799 = scalar_lea.vmem %s5, %s798
        $region56: #{bert_layer_forward.6} parent=47 // pred_fallthru
          _
      $region48: #{bert_layer_forward.6} parent=5 // pred_fallthru
        _
    $region6: #{bert_layer_forward.6} parent=1 // loop_footer
      %s19 = sadd.s32 1, %s15
    $region7: #{bert_layer_forward.6} parent=1 // loop_footer_branch
      %14 = sbr.rel target = $region3
    $region8: #{bert_layer_forward.6} parent=1 // loop_exit
      _
    %800 = vsyncpa [#allocation3], 1
    %s801 = scalar_lea.sflag [#allocation3], 1
    %802 = vsyncpa %s801, 1

// kernel: bert_layer_forward.9
$region0: #{bert_layer_forward.9}
  #allocation0 [shape = 'u32[]', space=smem, size = 0x4, offset = 0x4, fixed_abs, tag = 'smem constant byte address 0x4 - core index']
  #allocation1 [shape = 'u32[144,128]{1,0:T(1,128)}', space=vmem, size = 0x12000, scoped, tag = 'internal scratch']
  #allocation2 [shape = 'f32[16,32]{1,0:T(8,128)}', space=vmem, size = 0x2000, scoped, tag = 'scratch operand']
  %s0 = inlined_call_operand.vmem [shape: bf16[16,64], index: 0, kind: input, shape index: {}]
  %s1 = inlined_call_operand.vmem [shape: bf16[64,32], index: 1, kind: input, shape index: {}]
  %s2 = inlined_call_operand.vmem [shape: f32[1,32], index: 2, kind: input, shape index: {}]
  %s3 = inlined_call_operand.vmem [shape: f32[16,32], index: 3, kind: input, shape index: {}]
  %s4 = inlined_call_operand.vmem [shape: f32[1,32], index: 4, kind: input, shape index: {}]
  %s5 = inlined_call_operand.vmem [shape: f32[1,32], index: 5, kind: input, shape index: {}]
  %s6 = inlined_call_operand.hbm [shape: f32[16,32], index: 6, kind: output, shape index: {}]
  %s7 = sld [smem:[#allocation0]]
  $region42: #{bert_layer_forward.9} parent=0
    _
  %s9 = ssub.s32 1, %s7
  %s10 = scalar_select 0, %s9, %s7
  $region1: #{bert_layer_forward.9} parent=0
    #allocation3 [shape = 'u8[8192]{0}', space=vmem, size = 0x2000, scoped, tag = 'output window, operand 0, single buffered']
    #allocation4 [shape = 's32[1]{0}', space=sflag, size = 0x4, scoped, tag = 'scoped memory for bert_layer_forward.9']
    %11 = vsyncpa [#allocation4], 0
    // Predicated region
    $region2: #{bert_layer_forward.9} parent=1 // pred_check
      _
    $region3: #{bert_layer_forward.9} parent=1 // pred_check_branch
      %13 = sbr.rel (0) target = $region5
    $region4: #{bert_layer_forward.9} parent=1 // pred_region
      _
    $region5: #{bert_layer_forward.9} parent=1 // pred_fallthru
      _
    // Predicated region
    $region6: #{bert_layer_forward.9} parent=1 // pred_check
      _
    $region7: #{bert_layer_forward.9} parent=1 // pred_check_branch
      %15 = sbr.rel (0) target = $region9
    $region8: #{bert_layer_forward.9} parent=1 // pred_region
      _
    $region9: #{bert_layer_forward.9} parent=1 // pred_fallthru
      _
    // Predicated region
    $region10: #{bert_layer_forward.9} parent=1 // pred_check
      _
    $region11: #{bert_layer_forward.9} parent=1 // pred_check_branch
      %17 = sbr.rel (0) target = $region13
    $region12: #{bert_layer_forward.9} parent=1 // pred_region
      _
    $region13: #{bert_layer_forward.9} parent=1 // pred_fallthru
      _
    // Predicated region
    $region14: #{bert_layer_forward.9} parent=1 // pred_check
      _
    $region15: #{bert_layer_forward.9} parent=1 // pred_check_branch
      %19 = sbr.rel (0) target = $region17
    $region16: #{bert_layer_forward.9} parent=1 // pred_region
      _
    $region17: #{bert_layer_forward.9} parent=1 // pred_fallthru
      _
    // Predicated region
    $region18: #{bert_layer_forward.9} parent=1 // pred_check
      _
    $region19: #{bert_layer_forward.9} parent=1 // pred_check_branch
      %21 = sbr.rel (0) target = $region21
    $region20: #{bert_layer_forward.9} parent=1 // pred_region
      _
    $region21: #{bert_layer_forward.9} parent=1 // pred_fallthru
      _
    // Predicated region
    $region22: #{bert_layer_forward.9} parent=1 // pred_check
      _
    $region23: #{bert_layer_forward.9} parent=1 // pred_check_branch
      %23 = sbr.rel (0) target = $region25
    $region24: #{bert_layer_forward.9} parent=1 // pred_region
      _
    $region25: #{bert_layer_forward.9} parent=1 // pred_fallthru
      _
    %p25 = scmp.eq.s32.totalorder 0, 0
    // Predicated region
    $region26: #{bert_layer_forward.9} parent=1 // pred_check
      %p26 = pneg %p25
    $region27: #{bert_layer_forward.9} parent=1 // pred_check_branch
      %28 = sbr.rel (%p26) target = $region29
    $region28: #{bert_layer_forward.9} parent=1 // pred_region
      %vm29 = vcmask 261120
      %30 = vst.msk [vmem:[#allocation2] sm:$0xff] %vm29, 0.0
      %31 = vst.msk [vmem:[#allocation2 + $0x8] sm:$0xff] %vm29, 0.0
    $region29: #{bert_layer_forward.9} parent=1 // pred_fallthru
      _
    %v32 = vld [vmem:[#allocation2] sm:$0xff]
    %v33 = vld [vmem:[#allocation2 + $0x8] sm:$0xff]
    %v34 = vld [vmem:[%s0] sm:$0xf]
    %v35 = vld [vmem:[%s0 + $0x4] sm:$0xf]
    %v36 = vld [vmem:[%s1] sm:$0xf]
    %v37 = vld [vmem:[%s1 + $0x4] sm:$0xf]
    %v38 = vld [vmem:[%s1 + $0x8] sm:$0xf]
    %v39 = vld [vmem:[%s1 + $0xc] sm:$0xf]
    %v40 = vld [vmem:[%s1 + $0x10] sm:$0xf]
    %v41 = vld [vmem:[%s1 + $0x14] sm:$0xf]
    %v42 = vld [vmem:[%s1 + $0x18] sm:$0xf]
    %v43 = vld [vmem:[%s1 + $0x1c] sm:$0xf]
    %v46 = vunpack.c.l.b16 %v34
    %v47 = vunpack.c.l.b16 %v35
    %v48 = vpack.c.b16 %v47, %v46
    %v57 = vunpack.c.l.b16 %v36
    %v58 = vunpack.c.l.b16 %v37
    %v59 = vunpack.c.l.b16 %v38
    %v60 = vunpack.c.l.b16 %v39
    %v61 = vunpack.c.l.b16 %v40
    %v62 = vunpack.c.l.b16 %v41
    %v63 = vunpack.c.l.b16 %v42
    %v64 = vunpack.c.l.b16 %v43
    %v65 = vpack.c.b16 %v58, %v57
    %v66 = vpack.c.b16 %v60, %v59
    %v67 = vpack.c.b16 %v62, %v61
    %v68 = vpack.c.b16 %v64, %v63
    %vm73 = vcmask 523264
    %v75 = vsel %vm73, %v48, 0
    %77 = vmatprep.subr.bf16.mxu0 0
    %78 = vmatpush1.bf16.msra.mxu0 0
    %79 = vmatprep.subr.bf16.mxu0 0
    %80 = vmatpush1.bf16.msra.mxu0 0
    %81 = vmatprep.subr.bf16.mxu0 0
    %82 = vmatpush1.bf16.msra.mxu0 0
    %83 = vmatprep.subr.bf16.mxu0 0
    %84 = vmatpush1.bf16.msra.mxu0 0
    %85 = vmatprep.subr.bf16.mxu0 0
    %86 = vmatpush1.bf16.msra.mxu0 %v68
    %87 = vmatprep.subr.bf16.mxu0 0
    %88 = vmatpush1.bf16.msra.mxu0 %v67
    %89 = vmatprep.subr.bf16.mxu0 0
    %90 = vmatpush1.bf16.msra.mxu0 %v66
    %91 = vmatprep.subr.bf16.mxu0 0
    %92 = vmatpush1.bf16.msra.mxu0 %v65
    %93 = vmatprep.subr.bf16.mxu0 0
    %94 = vmatpush2.bf16.msra.mxu0 0
    %95 = vmatprep.subr.bf16.mxu0 0
    %96 = vmatpush2.bf16.msra.mxu0 0
    %97 = vmatprep.subr.bf16.mxu0 0
    %98 = vmatpush2.bf16.msra.mxu0 0
    %99 = vmatprep.subr.bf16.mxu0 0
    %100 = vmatpush2.bf16.msra.mxu0 0
    %101 = vmatprep.subr.bf16.mxu0 0
    %102 = vmatpush2.bf16.msra.mxu0 0
    %103 = vmatprep.subr.bf16.mxu0 0
    %104 = vmatpush2.bf16.msra.mxu0 0
    %105 = vmatprep.subr.bf16.mxu0 0
    %106 = vmatpush2.bf16.msra.mxu0 0
    %107 = vmatprep.subr.bf16.mxu0 0
    %108 = vmatpush2.bf16.msra.mxu0 0
    %109 = vmatprep.mubr.bf16.mxu0 0
    %110 = vmatmul.mubr.bf16.gmra.mxu0 %v75
    %v111 = vpop.f32.mrf.mxu0
    %v112 = vadd.f32 0.0, %v111
    %v113 = vpop.f32.mrf.mxu0
    %v114 = vpop.f32.mrf.mxu0
    %v115 = vadd.f32 0.0, %v114
    %v116 = vpop.f32.mrf.mxu0
    %117 = vdwg.mxu0
    %v118 = vadd.f32 %v32, %v112
    %v119 = vadd.f32 %v33, %v115
    %vm120 = vcmask 261120
    %121 = vst.msk [vmem:[#allocation2] sm:$0xff] %vm120, %v118
    %122 = vst.msk [vmem:[#allocation2 + $0x8] sm:$0xff] %vm120, %v119
    // Predicated region
    $region30: #{bert_layer_forward.9} parent=1 // pred_check
      %p123 = pneg %p25
    $region31: #{bert_layer_forward.9} parent=1 // pred_check_branch
      %125 = sbr.rel (%p123) target = $region33
    $region32: #{bert_layer_forward.9} parent=1 // pred_region
      %v126 = vld [vmem:[#allocation2] sm:$0xff]
      %v127 = vld [vmem:[#allocation2 + $0x8] sm:$0xff]
      %v128 = vld [vmem:[%s2] sm:$0x1]
      %v130 = vlaneseq
      %v131 = vshrl.u32 %v130, 7
      %v132 = vsub.s32 0, %v131
      %v133 = vrot.slane %v128, %v132
      %v135 = vadd.f32 %v126, %v133
      %v136 = vadd.f32 %v127, %v133
      %v137 = vld [vmem:[%s3] sm:$0xff]
      %v138 = vld [vmem:[%s3 + $0x8] sm:$0xff]
      %v139 = vadd.f32 %v135, %v137
      %v140 = vadd.f32 %v136, %v138
      %v141 = vsel %vm120, %v139, 0.0
      %142 = vadd.xlane.f32.xlu0 %v141
      %v143 = vpop.xlane.xlu0 %142
      %v144 = vsel %vm120, %v140, 0.0
      %145 = vadd.xlane.f32.xlu0 %v144
      %v146 = vpop.xlane.xlu0 %145
      %v147 = vrcp.pop 32.0
      %v148 = vmul.f32 %v143, %v147
      %v149 = vmul.f32 %v146, %v147
      %v150 = vsub.f32 %v139, %v148
      %v151 = vsub.f32 %v140, %v149
      %v152 = vmul.f32 %v150, %v150
      %v153 = vmul.f32 %v151, %v151
      %v154 = vsel %vm120, %v152, 0.0
      %155 = vadd.xlane.f32.xlu0 %v154
      %v156 = vpop.xlane.xlu0 %155
      %v157 = vsel %vm120, %v153, 0.0
      %158 = vadd.xlane.f32.xlu0 %v157
      %v159 = vpop.xlane.xlu0 %158
      %v160 = vmul.f32 %v156, %v147
      %v161 = vmul.f32 %v159, %v147
      %v162 = vadd.f32 %v160, 1e-12
      %v163 = vadd.f32 %v161, 1e-12
      %v164 = vrsqrt.pop %v162
      %v165 = vrsqrt.pop %v163
      %v166 = vmul.f32 %v150, %v164
      %v167 = vmul.f32 %v151, %v165
      %v168 = vld [vmem:[%s4] sm:$0x1]
      %v170 = vlaneseq
      %v171 = vshrl.u32 %v170, 7
      %v172 = vsub.s32 0, %v171
      %v173 = vrot.slane %v168, %v172
      %v175 = vmul.f32 %v166, %v173
      %v176 = vmul.f32 %v167, %v173
      %v177 = vld [vmem:[%s5] sm:$0x1]
      %v179 = vlaneseq
      %v180 = vshrl.u32 %v179, 7
      %v181 = vsub.s32 0, %v180
      %v182 = vrot.slane %v177, %v181
      %v184 = vadd.f32 %v175, %v182
      %v185 = vadd.f32 %v176, %v182
      %186 = vst.msk [vmem:[#allocation3] sm:$0xff] %vm120, %v184
      %187 = vst.msk [vmem:[#allocation3 + $0x8] sm:$0xff] %vm120, %v185
    $region33: #{bert_layer_forward.9} parent=1 // pred_fallthru
      _
    // Predicated region
    $region34: #{bert_layer_forward.9} parent=1 // pred_check
      _
    $region35: #{bert_layer_forward.9} parent=1 // pred_check_branch
      %189 = sbr.rel (0) target = $region37
    $region36: #{bert_layer_forward.9} parent=1 // pred_region
      %s191 = ssub.s32 256, 256
      %192 = vsyncadd [#allocation4], %s191
      %s193 = sshll.u32 [#allocation3], 4
      %s194 = int_to_ptr.vmem [resolvable:$true] %s193
      %199 = dma.vmem_to_hbm [thread:$0]  %s194, 256, %s6, [#allocation4], 128, 128, 8
    $region37: #{bert_layer_forward.9} parent=1 // pred_fallthru
      _
    // Predicated region
    $region38: #{bert_layer_forward.9} parent=1 // pred_check
      _
    $region39: #{bert_layer_forward.9} parent=1 // pred_check_branch
      %201 = sbr.rel (0) target = $region41
    $region40: #{bert_layer_forward.9} parent=1 // pred_region
      %202 = dma.done [#allocation4], 256
    $region41: #{bert_layer_forward.9} parent=1 // pred_fallthru
      _
    %203 = vsyncpa [#allocation4], 1

</llo_original>
